<compile_context>
chip_gen: v7x
topology: tpu7x:2x2x1
jax: 0.10.0
libtpu: 0.0.40
codegen_flags: <defaults>
</compile_context>

<pallas_src>
import functools

import jax
import jax.numpy as jnp
from jax.experimental import pallas as pl
from jax.experimental.pallas import tpu as pltpu


def _round_up(x, m):
    return (x + m - 1) // m * m


def _vep_pair_kernel(ids_ref, pair_ref, o_ref, *, v_pad):
    """One (TB batch rows, TL concatenated-sequence positions) tile.

    ids_ref  : (2, TB, TL) int32   [ref, alt] ids, fwd ++ rev concatenated on L
    pair_ref : (V_pad*V_pad, D_pad) bf16   P[v*V_pad+w, d] = 0.5*proj[v,d]*proj[w,d]
    o_ref    : (TB, D_pad) f32     resident accumulator across the L grid axis
    """
    l = pl.program_id(1)

    @pl.when(l == 0)
    def _init():
        o_ref[...] = jnp.zeros_like(o_ref)

    ids_r = ids_ref[0]                                           # (TB, TL)
    ids_a = ids_ref[1]                                           # (TB, TL)
    tb, tl = ids_r.shape

    # One-hots in native MXU layouts for the counts matmul:
    #   ref one-hot with the L tile on lanes (lane-dense),
    #   alt one-hot with the vocab on lanes (16 of 128 lanes -> small, accepted).
    iota_r = jax.lax.broadcasted_iota(jnp.int32, (tb, v_pad, tl), 1)
    oh_r = (ids_r[:, None, :] == iota_r).astype(jnp.bfloat16)    # (TB, V, TL)
    iota_a = jax.lax.broadcasted_iota(jnp.int32, (tb, tl, v_pad), 2)
    oh_a = (ids_a[:, :, None] == iota_a).astype(jnp.bfloat16)    # (TB, TL, V)

    # Pair-count matmul: contraction over the sequence tile (K = TL) on the
    # MXU; 0/1 bf16 products accumulate exactly in f32 -> exact integer counts.
    counts = jnp.einsum("bvt,btw->bvw", oh_r, oh_a,
                        preferred_element_type=jnp.float32)      # (TB, V, V)

    # TL <= 256 guarantees every count <= 256, i.e. exactly representable in
    # bf16, so this cast is lossless.
    counts = counts.reshape(tb, v_pad * v_pad).astype(jnp.bfloat16)

    # Output matmul: (TB, V^2) @ (V^2, D_pad), K = V_pad^2, f32 accumulation
    # directly into the resident output block.
    o_ref[...] += jnp.dot(counts, pair_ref[...],
                          preferred_element_type=jnp.float32)


def vep_embedding_forward(input_ids_ref_fwd, input_ids_alt_fwd,
                          input_ids_ref_rev, input_ids_alt_rev,
                          embed_table, w, b, *, tb=64, tl=256):
    """ids_*: (B, L) int; embed_table: (V, E); w: (E, D); b: (D,) -> (B, D) f32."""
    B, L = input_ids_ref_fwd.shape
    V, E = embed_table.shape
    D = w.shape[1]

    # ---- fold the projection into a per-token table, then into the PAIR table.
    proj = (embed_table.astype(jnp.float32) @ w.astype(jnp.float32)
            + b.astype(jnp.float32))                             # (V, D) f32

    D_pad = _round_up(max(D, 128), 128)          # lane-dense output columns
    V_pad = _round_up(V + 1, 8)                  # +1 all-zero "null" padding id
    proj_pad = jnp.zeros((V_pad, D_pad), jnp.float32).at[:V, :D].set(proj)

    # P[v*V_pad + w, d] = 0.5 * proj[v, d] * proj[w, d]; 0.5 fwd/rev averaging
    # folded in here so the kernel never multiplies by it.  ~64 KiB bf16.
    pair = 0.5 * proj_pad[:, None, :] * proj_pad[None, :, :]     # (V, V, D)
    pair = pair.reshape(V_pad * V_pad, D_pad).astype(jnp.bfloat16)

    # ---- fold fwd/rev into one concatenated sequence axis (score is linear
    # in the per-position products, so (fwd+rev)/2 == 0.5 * sum over 2L).
    null_id = V
    ids_r = jnp.concatenate([input_ids_ref_fwd, input_ids_ref_rev], axis=1)
    ids_a = jnp.concatenate([input_ids_alt_fwd, input_ids_alt_rev], axis=1)
    ids_all = jnp.stack([ids_r, ids_a], axis=0).astype(jnp.int32)  # (2, B, 2L)
    L2 = 2 * L

    # ---- tiling --------------------------------------------------------------
    # TL: multiple of 128 (lane-dense ids loads) and <= 256 (exact bf16 counts).
    TL = min(256, max(128, (tl // 128) * 128))
    L2_pad = _round_up(max(L2, 1), TL)

    TB = max(8, min(_round_up(tb, 8), _round_up(B, 8)))
    B_pad = _round_up(B, TB)
    # Megacore (v7x): keep >= 2 "parallel" grid steps on the batch axis when
    # the batch allows it so both TensorCores get work.
    while B_pad // TB < 2 and TB > 8:
        TB = _round_up(TB // 2, 8)
        B_pad = _round_up(B, TB)

    ids_all = jnp.pad(ids_all, ((0, 0), (0, B_pad - B), (0, L2_pad - L2)),
                      constant_values=null_id)

    grid = (B_pad // TB, L2_pad // TL)

    kernel = functools.partial(_vep_pair_kernel, v_pad=V_pad)
    out = pl.pallas_call(
        kernel,
        out_shape=jax.ShapeDtypeStruct((B_pad, D_pad), jnp.float32),
        grid_spec=pltpu.PrefetchScalarGridSpec(
            num_scalar_prefetch=0,
            grid=grid,
            in_specs=[
                pl.BlockSpec((2, TB, TL), lambda i, l: (0, i, l)),
                # Constant-index pair table: fetched once; default double
                # buffering costs only ~64 KiB so we keep the default.
                pl.BlockSpec((V_pad * V_pad, D_pad), lambda i, l: (0, 0)),
            ],
            out_specs=pl.BlockSpec((TB, D_pad), lambda i, l: (i, 0)),
        ),
        compiler_params=pltpu.CompilerParams(
            dimension_semantics=("parallel", "arbitrary")),
    )(ids_all, pair)

    return out[:B, :D]


if __name__ == "__main__":
    # Small deterministic setup; shapes deliberately exercise the padding and
    # accumulation paths: B=12 -> TB=8 (2 "parallel" grid steps), L=80 ->
    # 2L=160 padded to 256 with TL=128 (2 accumulation steps), D=48 -> padded
    # to 128 lanes, V=12 (DNA vocab) -> V_pad=16 (pair dim 256).
    B, L, E, D, V = 12, 80, 32, 48, 12
    key = jax.random.PRNGKey(0)
    k_emb, k_w, k_b, k1, k2, k3, k4 = jax.random.split(key, 7)

    embed_table = jax.random.normal(k_emb, (V, E), dtype=jnp.float32) * 0.1
    w = jax.random.normal(k_w, (E, D), dtype=jnp.float32) * 0.1
    b = jax.random.normal(k_b, (D,), dtype=jnp.float32) * 0.1

    ids_ref_fwd = jax.random.randint(k1, (B, L), 0, V, dtype=jnp.int32)
    ids_alt_fwd = jax.random.randint(k2, (B, L), 0, V, dtype=jnp.int32)
    ids_ref_rev = jax.random.randint(k3, (B, L), 0, V, dtype=jnp.int32)
    ids_alt_rev = jax.random.randint(k4, (B, L), 0, V, dtype=jnp.int32)

    out = vep_embedding_forward(ids_ref_fwd, ids_alt_fwd,
                                ids_ref_rev, ids_alt_rev,
                                embed_table, w, b, tl=128)
    jax.block_until_ready(out)

    # ---- pure-JAX references of the same semantics ---------------------------
    proj = embed_table @ w + b                                   # (V, D) f32
    ids_r_cat = jnp.concatenate([ids_ref_fwd, ids_ref_rev], axis=1)
    ids_a_cat = jnp.concatenate([ids_alt_fwd, ids_alt_rev], axis=1)

    def score(tbl):                                              # tbl: (V, D) f32
        return 0.5 * jnp.sum(tbl[ids_r_cat] * tbl[ids_a_cat], axis=1)

    # Matched reference: same bf16-rounded pair table the kernel uses (only
    # summation-order differences remain).
    pair_f32 = 0.5 * proj[:, None, :] * proj[None, :, :]         # (V, V, D)
    pair_m = pair_f32.astype(jnp.bfloat16).astype(jnp.float32)
    ref_match = jnp.sum(pair_m[ids_r_cat, ids_a_cat], axis=1)    # (B, D)
    ref_full = score(proj)                                       # pure f32

    assert out.shape == (B, D)
    assert out.dtype == jnp.float32
    assert jnp.allclose(out, ref_match, atol=1e-4, rtol=1e-4)
    assert jnp.allclose(out, ref_full, atol=1e-2, rtol=2e-2)
    print("KERNEL_OK")
</pallas_src>

<mosaic_0001>
module attributes {stable_mosaic.version = 11 : i64} {
  func.func @_vep_pair_kernel(%arg0: i32, %arg1: i32, %arg2: memref<2x8x128xi32, #tpu.memory_space<vmem>>, %arg3: memref<256x128xbf16, #tpu.memory_space<vmem>>, %arg4: memref<8x128xf32, #tpu.memory_space<vmem>>) attributes {dimension_semantics = [#tpu.dimension_semantics<parallel>, #tpu.dimension_semantics<arbitrary>], iteration_bounds = array<i64: 2, 2>, scalar_prefetch = 0 : i64, scratch_operands = 0 : i64, tpu.core_type = #tpu.core_type<tc>, window_params = [{transform_indices = @transform_0, window_bounds = array<i64: 2, 8, 128>}, {pipeline_mode = #tpu.pipeline_mode<synchronous>, transform_indices = @transform_1, window_bounds = array<i64: 256, 128>}, {transform_indices = @transform_2, window_bounds = array<i64: 8, 128>}]} {
    %c0_i32 = arith.constant 0 : i32
    %0 = arith.cmpi eq, %arg1, %c0_i32 : i32
    %1 = arith.extui %0 : i1 to i32
    %c0_i32_0 = arith.constant 0 : i32
    %2 = arith.cmpi ne, %1, %c0_i32_0 : i32
    scf.if %2 {
      %cst_12 = arith.constant 0.000000e+00 : f32
      %29 = vector.broadcast %cst_12 : f32 to vector<8x128xf32>
      %c0_13 = arith.constant 0 : index
      %c0_14 = arith.constant 0 : index
      %30 = vector.load %arg4[%c0_13, %c0_14] : memref<8x128xf32, #tpu.memory_space<vmem>>, vector<8x128xf32>
      tpu.vector_store %arg4[%c0_13, %c0_14], %29 {strides = array<i32>} : memref<8x128xf32, #tpu.memory_space<vmem>>, vector<8x128xf32>,
    } else {
    }
    %c0 = arith.constant 0 : index
    %c0_1 = arith.constant 0 : index
    %c0_2 = arith.constant 0 : index
    %3 = vector.load %arg2[%c0, %c0_1, %c0_2] : memref<2x8x128xi32, #tpu.memory_space<vmem>>, vector<1x8x128xi32>
    %4 = vector.shape_cast %3 : vector<1x8x128xi32> to vector<8x128xi32>
    %c1 = arith.constant 1 : index
    %c0_3 = arith.constant 0 : index
    %c0_4 = arith.constant 0 : index
    %5 = vector.load %arg2[%c1, %c0_3, %c0_4] : memref<2x8x128xi32, #tpu.memory_space<vmem>>, vector<1x8x128xi32>
    %6 = vector.shape_cast %5 : vector<1x8x128xi32> to vector<8x128xi32>
    %7 = tpu.iota {dimensions = array<i32: 1>} : vector<8x16x128xi32>
    %8 = vector.shape_cast %4 : vector<8x128xi32> to vector<8x1x128xi32>
    %9 = vector.broadcast %8 : vector<8x1x128xi32> to vector<8x16x128xi32>
    %10 = arith.cmpi eq, %9, %7 : vector<8x16x128xi32>
    %11 = arith.extui %10 : vector<8x16x128xi1> to vector<8x16x128xi32>
    %12 = arith.sitofp %11 : vector<8x16x128xi32> to vector<8x16x128xf32>
    %13 = arith.truncf %12 : vector<8x16x128xf32> to vector<8x16x128xbf16>
    %14 = tpu.iota {dimensions = array<i32: 2>} : vector<8x128x16xi32>
    %15 = vector.shape_cast %6 : vector<8x128xi32> to vector<8x128x1xi32>
    %16 = vector.broadcast %15 : vector<8x128x1xi32> to vector<8x128x16xi32>
    %17 = arith.cmpi eq, %16, %14 : vector<8x128x16xi32>
    %18 = arith.extui %17 : vector<8x128x16xi1> to vector<8x128x16xi32>
    %19 = arith.sitofp %18 : vector<8x128x16xi32> to vector<8x128x16xf32>
    %20 = arith.truncf %19 : vector<8x128x16xf32> to vector<8x128x16xbf16>
    "tpu.trace_start"() <{level = 10 : i32, message = "bvt,btw->bvw"}> : () -> ()
    %cst = arith.constant dense<0.000000e+00> : vector<8x16x16xf32>
    %21 = tpu.matmul %13, %20, %cst {dimension_numbers = #tpu.dot_dimension_numbers<[2], [1], [1], [2], [0, 0, 0, 1, 1, 2], [0], [0]>} : vector<8x16x128xbf16>, vector<8x128x16xbf16>, vector<8x16x16xf32> -> vector<8x16x16xf32>
    "tpu.trace_stop"() : () -> ()
    %22 = vector.shape_cast %21 : vector<8x16x16xf32> to vector<8x256xf32>
    %23 = arith.truncf %22 : vector<8x256xf32> to vector<8x256xbf16>
    %c0_5 = arith.constant 0 : index
    %c0_6 = arith.constant 0 : index
    %24 = vector.load %arg4[%c0_5, %c0_6] : memref<8x128xf32, #tpu.memory_space<vmem>>, vector<8x128xf32>
    %c0_7 = arith.constant 0 : index
    %c0_8 = arith.constant 0 : index
    %25 = vector.load %arg3[%c0_7, %c0_8] : memref<256x128xbf16, #tpu.memory_space<vmem>>, vector<256x128xbf16>
    %cst_9 = arith.constant dense<0.000000e+00> : vector<8x128xf32>
    %26 = tpu.matmul %23, %25, %cst_9 {dimension_numbers = #tpu.dot_dimension_numbers<[1], [0], [0], [1], [0, 0, 1, 1], [], []>} : vector<8x256xbf16>, vector<256x128xbf16>, vector<8x128xf32> -> vector<8x128xf32>
    %27 = arith.addf %24, %26 : vector<8x128xf32>
    %c0_10 = arith.constant 0 : index
    %c0_11 = arith.constant 0 : index
    %28 = vector.load %arg4[%c0_10, %c0_11] : memref<8x128xf32, #tpu.memory_space<vmem>>, vector<8x128xf32>
    tpu.vector_store %arg4[%c0_10, %c0_11], %27 {strides = array<i32>} : memref<8x128xf32, #tpu.memory_space<vmem>>, vector<8x128xf32>,
    return
  }
  func.func @transform_0(%arg0: i32, %arg1: i32) -> (i32, i32, i32) {
    %c0_i32 = arith.constant 0 : i32
    %c0_i32_0 = arith.constant 0 : i32
    return %c0_i32, %arg0, %arg1 : i32, i32, i32
  }
  func.func @transform_1(%arg0: i32, %arg1: i32) -> (i32, i32) {
    %c0_i32 = arith.constant 0 : i32
    %c0_i32_0 = arith.constant 0 : i32
    %c0_i32_1 = arith.constant 0 : i32
    return %c0_i32, %c0_i32_0 : i32, i32
  }
  func.func @transform_2(%arg0: i32, %arg1: i32) -> (i32, i32) {
    %c0_i32 = arith.constant 0 : i32
    %c0_i32_0 = arith.constant 0 : i32
    return %arg0, %c0_i32 : i32, i32
  }
}

</mosaic_0001>

<llo_original>
// kernel: tpu_custom_call.1
$region0: #{tpu_custom_call.1}
  #allocation0 [shape = 'u32[]', space=smem, size = 0x4, offset = 0x4, fixed_abs, tag = 'smem constant byte address 0x4 - core index']
  #allocation1 [shape = 'u32[144,128]{1,0:T(1,128)}', space=vmem, size = 0x12000, scoped, tag = 'internal scratch']
  %s0 = inlined_call_operand.hbm [shape: s32[2,16,256], index: 0, kind: input, shape index: {}]
  %s1 = inlined_call_operand.hbm [shape: bf16[256,128], index: 1, kind: input, shape index: {}]
  %s2 = inlined_call_operand.hbm [shape: f32[16,128], index: 2, kind: output, shape index: {}]
  %s3 = sld [smem:[#allocation0]]
  $region53: #{tpu_custom_call.1} parent=0
    _
  %s5 = ssub.s32 1, %s3
  %s6 = scalar_select 0, %s5, %s3
  $region1: #{tpu_custom_call.1} parent=0
    #allocation2 [shape = 'u8[16384]{0}', space=vmem, size = 0x4000, scoped, tag = 'input window, operand 0']
    #allocation3 [shape = 's32[2]{0}', space=sflag, size = 0x8, scoped, tag = 'scoped memory for tpu_custom_call.1']
    #allocation4 [shape = 's32[2]{0}', space=sflag, size = 0x8, scoped, tag = 'scoped memory for tpu_custom_call.1']
    #allocation5 [shape = 'u8[65536]{0}', space=vmem, size = 0x10000, scoped, tag = 'input window, operand 1, single buffered']
    #allocation6 [shape = 's32[1]{0}', space=sflag, size = 0x4, scoped, tag = 'scoped memory for tpu_custom_call.1']
    #allocation7 [shape = 'u8[8192]{0}', space=vmem, size = 0x2000, scoped, tag = 'output window, operand 0']
    %7 = vsyncpa [#allocation3], 0
    %s8 = scalar_lea.sflag [#allocation3], 1
    %9 = vsyncpa %s8, 0
    %10 = vsyncpa [#allocation6], 0
    %11 = vsyncpa [#allocation4], 0
    %s12 = scalar_lea.sflag [#allocation4], 1
    %13 = vsyncpa %s12, 0
    loop: start=0, step=1, limit=6
    $region2: #{tpu_custom_call.1} parent=1 // loop_pre_header
      _
    $region3: #{tpu_custom_call.1} parent=1 // loop_header
      %s15 = sphi 0, %s19
      %p16 = scmp.ge.s32.totalorder %s15, 6
      %s22 = sphi 0, %s34
      %s23 = sphi 0, %s30
      %s24 = sphi 0, %s22
      %s25 = sphi 0, %s23
      %s26 = sphi 0, %s24
      %s27 = sphi 0, %s25
      %s39 = sphi 0, %s41
      %s42 = sphi 0, %s39
      %s43 = sphi 0, %s42
      %s59 = sphi 0, %s43
      %s63 = sphi 0, %s63
      %s65 = sphi 0, %s63
      %s66 = sphi 0, %s65
      %s80 = sphi 0, %s66
      %s86 = sphi 0, %s88
      %s89 = sphi 0, %s86
      %s90 = sphi 0, %s89
      %s106 = sphi 0, %s90
    $region4: #{tpu_custom_call.1} parent=1 // loop_header_branch
      %18 = sbr.rel (%p16) target = $region8
    $region5: #{tpu_custom_call.1} parent=1 // loop_body
      %s20 = ssub.s32 %s15, 1
      %s21 = ssub.s32 %s15, 2
      %s28 = sadd.s32 1, %s23
      %p29 = scmp.ge.s32.totalorder %s28, 2
      %s30 = scalar_select %p29, 0, %s28
      %s31 = sadd.s32 1, %s22
      %s32 = scalar_select %p29, %s31, %s22
      %p33 = scmp.ge.s32.totalorder %s32, 2
      %s34 = scalar_select %p33, 0, %s32
      %s35 = ssub.s32 %s22, %s34
      %s36 = ssub.s32 %s23, %s30
      %s37 = sor.u32 %s35, %s36
      %p38 = scmp.eq.s32.totalorder %s37, 0
      %s40 = sadd.s32 %s39, 1
      %s41 = scalar_select %p38, %s39, %s40
      %p44 = pneg %p38
      %p45 = scmp.eq.s32.totalorder %s15, 3
      %p46 = por %p44, %p45
      %p47 = scmp.ne.s32.totalorder %s39, %s42
      %p48 = scmp.eq.s32.totalorder %s15, 0
      %p49 = por %p47, %p48
      %p50 = scmp.ne.s32.totalorder %s39, %s42
      %p51 = scmp.eq.s32.totalorder %s20, 3
      %p52 = por %p50, %p51
      %p53 = scmp.ne.s32.totalorder %s42, %s43
      %p54 = scmp.eq.s32.totalorder %s20, 0
      %p55 = por %p53, %p54
      %p56 = scmp.ne.s32.totalorder %s42, %s43
      %p57 = scmp.eq.s32.totalorder %s21, 3
      %p58 = por %p56, %p57
      %p60 = scmp.ne.s32.totalorder %s43, %s59
      %p61 = scmp.eq.s32.totalorder %s21, 0
      %p62 = por %p60, %p61
      %s64 = sadd.s32 %s63, 1
      %p67 = scmp.eq.s32.totalorder %s15, 3
      %p68 = scmp.ne.s32.totalorder %s63, %s65
      %p69 = scmp.eq.s32.totalorder %s15, 0
      %p70 = por %p68, %p69
      %p71 = scmp.ne.s32.totalorder %s63, %s65
      %p72 = scmp.eq.s32.totalorder %s20, 3
      %p73 = por %p71, %p72
      %p74 = scmp.ne.s32.totalorder %s65, %s66
      %p75 = scmp.eq.s32.totalorder %s20, 0
      %p76 = por %p74, %p75
      %p77 = scmp.ne.s32.totalorder %s65, %s66
      %p78 = scmp.eq.s32.totalorder %s21, 3
      %p79 = por %p77, %p78
      %p81 = scmp.ne.s32.totalorder %s66, %s80
      %p82 = scmp.eq.s32.totalorder %s21, 0
      %p83 = por %p81, %p82
      %s84 = ssub.s32 %s22, %s34
      %p85 = scmp.eq.s32.totalorder %s84, 0
      %s87 = sadd.s32 %s86, 1
      %s88 = scalar_select %p85, %s86, %s87
      %p91 = pneg %p85
      %p92 = scmp.eq.s32.totalorder %s15, 3
      %p93 = por %p91, %p92
      %p94 = scmp.ne.s32.totalorder %s86, %s89
      %p95 = scmp.eq.s32.totalorder %s15, 0
      %p96 = por %p94, %p95
      %p97 = scmp.ne.s32.totalorder %s86, %s89
      %p98 = scmp.eq.s32.totalorder %s20, 3
      %p99 = por %p97, %p98
      %p100 = scmp.ne.s32.totalorder %s89, %s90
      %p101 = scmp.eq.s32.totalorder %s20, 0
      %p102 = por %p100, %p101
      %p103 = scmp.ne.s32.totalorder %s89, %s90
      %p104 = scmp.eq.s32.totalorder %s21, 3
      %p105 = por %p103, %p104
      %p107 = scmp.ne.s32.totalorder %s90, %s106
      %p108 = scmp.eq.s32.totalorder %s21, 0
      %p109 = por %p107, %p108
      %p110 = scmp.le.s32.totalorder 1, %s15
      %p111 = scmp.lt.s32.totalorder %s15, 5
      %p112 = pnand %p110, %p111
      %p113 = pneg %p112
      // Predicated region
      $region9: #{tpu_custom_call.1} parent=5 // pred_check
        _
      $region10: #{tpu_custom_call.1} parent=5 // pred_check_branch
        %115 = sbr.rel (%p112) target = $region12
      $region11: #{tpu_custom_call.1} parent=5 // pred_region
        %s116 = ssub.s32 %s15, 1
        // Predicated region
        $region13: #{tpu_custom_call.1} parent=11 // pred_check
          %p117 = pneg %p76
        $region14: #{tpu_custom_call.1} parent=11 // pred_check_branch
          %119 = sbr.rel (%p117) target = $region16
        $region15: #{tpu_custom_call.1} parent=11 // pred_region
          %s121 = ssub.s32 2048, 2048
          %122 = vsyncadd [#allocation6], %s121
          %s123 = sshll.u32 [#allocation5], 4
          %s124 = int_to_ptr.vmem [resolvable:$true] %s123
          %129 = dma.hbm_to_vmem [thread:$0]  %s1, 2048, %s124, [#allocation6], 64, 64, 4
        $region16: #{tpu_custom_call.1} parent=11 // pred_fallthru
          _
      $region12: #{tpu_custom_call.1} parent=5 // pred_fallthru
        _
      %p130 = scmp.lt.s32.totalorder %s15, 4
      // Predicated region
      $region17: #{tpu_custom_call.1} parent=5 // pred_check
        %p131 = pneg %p130
      $region18: #{tpu_custom_call.1} parent=5 // pred_check_branch
        %133 = sbr.rel (%p131) target = $region20
      $region19: #{tpu_custom_call.1} parent=5 // pred_region
        // Predicated region
        $region21: #{tpu_custom_call.1} parent=19 // pred_check
          %p134 = pneg %p49
        $region22: #{tpu_custom_call.1} parent=19 // pred_check_branch
          %136 = sbr.rel (%p134) target = $region24
        $region23: #{tpu_custom_call.1} parent=19 // pred_region
          %s137 = sand.u32 %s39, 1
          %s138 = scalar_lea.sflag [#allocation3], %s137
          %s139 = sand.u32 %s39, 1
          %s140 = smul.addr %s139, 16
          %s141 = scalar_lea.vmem [#allocation2], %s140
          %s143 = ssub.s32 256, 256
          %144 = vsyncadd %s138, %s143
          %s145 = smul.addr %s22, 2
          %s146 = sadd.s32 %s23, %s145
          %s147 = smul.addr %s146, 128
          %s148 = scalar_lea.hbm %s0, %s147
          %s149 = sshll.u32 %s141, 4
          %s150 = int_to_ptr.vmem [resolvable:$true] %s149
          %155 = dma.hbm_to_vmem [thread:$0]  %s148, 256, %s150, %s138, 512, 128, 8
        $region24: #{tpu_custom_call.1} parent=19 // pred_fallthru
          _
      $region20: #{tpu_custom_call.1} parent=5 // pred_fallthru
        _
      %p156 = scmp.le.s32.totalorder 1, %s15
      %p157 = scmp.lt.s32.totalorder %s15, 5
      %p158 = pnand %p156, %p157
      %p159 = pneg %p158
      // Predicated region
      $region25: #{tpu_custom_call.1} parent=5 // pred_check
        _
      $region26: #{tpu_custom_call.1} parent=5 // pred_check_branch
        %161 = sbr.rel (%p158) target = $region28
      $region27: #{tpu_custom_call.1} parent=5 // pred_region
        %s162 = ssub.s32 %s15, 1
        %s163 = sand.u32 %s42, 1
        %s164 = scalar_lea.sflag [#allocation3], %s163
        %s165 = sand.u32 %s42, 1
        %s166 = smul.addr %s165, 16
        %s167 = scalar_lea.vmem [#allocation2], %s166
        // Predicated region
        $region29: #{tpu_custom_call.1} parent=27 // pred_check
          %p168 = pneg %p55
        $region30: #{tpu_custom_call.1} parent=27 // pred_check_branch
          %170 = sbr.rel (%p168) target = $region32
        $region31: #{tpu_custom_call.1} parent=27 // pred_region
          %171 = dma.done %s164, 256
        $region32: #{tpu_custom_call.1} parent=27 // pred_fallthru
          _
        // Predicated region
        $region33: #{tpu_custom_call.1} parent=27 // pred_check
          %p172 = pneg %p76
        $region34: #{tpu_custom_call.1} parent=27 // pred_check_branch
          %174 = sbr.rel (%p172) target = $region36
        $region35: #{tpu_custom_call.1} parent=27 // pred_region
          %175 = dma.done [#allocation6], 2048
        $region36: #{tpu_custom_call.1} parent=27 // pred_fallthru
          _
        %s176 = sand.u32 %s42, 1
        %s177 = scalar_lea.sflag [#allocation3], %s176
        %s178 = sand.u32 %s42, 1
        %s179 = smul.addr %s178, 16
        %s180 = scalar_lea.vmem [#allocation2], %s179
        %p181 = pneg %p55
        %p182 = pneg %p52
        %p183 = pneg %p76
        %p184 = pneg %p73
        %p185 = pneg %p102
        %p186 = pneg %p99
        %s187 = sand.u32 %s89, 1
        %s188 = scalar_lea.sflag [#allocation4], %s187
        %s189 = sand.u32 %s89, 1
        %s190 = smul.addr %s189, 8
        %s191 = scalar_lea.vmem [#allocation7], %s190
        %p193 = scmp.eq.s32.totalorder %s25, 0
        // Predicated region
        $region37: #{tpu_custom_call.1} parent=27 // pred_check
          %p194 = pneg %p193
        $region38: #{tpu_custom_call.1} parent=27 // pred_check_branch
          %196 = sbr.rel (%p194) target = $region40
        $region39: #{tpu_custom_call.1} parent=27 // pred_region
          %197 = vst [vmem:[%s191] sm:$0xff] 0.0
        $region40: #{tpu_custom_call.1} parent=27 // pred_fallthru
          _
        %v198 = vld [vmem:[%s167] sm:$0xff]
        %s199 = scalar_lea.vmem %s167, 8 [#allocation2]
        %v200 = vld [vmem:[%s199] sm:$0xff]
        %v201 = vlaneseq
        %v202 = vshrl.u32 %v201, 7
        %v203 = vadd.s32 %v202, 8
        %v204 = vcombine.high %v198, %v198
        %v206 = vunpack.c.l.s4 1966171168
        %v207 = vunpack.c.0.s8 %v206
        %v208 = vlaneseq
        %v209 = vshrl.u32 %v208, 7
        %v210 = vsub.s32 %v207, %v209
        %v211 = vrot.slane %v198, %v210
        %v213 = vunpack.c.l.s4 1966171168
        %v214 = vunpack.c.0.s8 %v213
        %v215 = vlaneseq
        %v216 = vshrl.u32 %v215, 7
        %v217 = vsub.s32 %v214, %v216
        %v218 = vrot.slane %v204, %v217
        %v219 = vcombine.high %v211, %v211
        %v220 = vcombine.high %v218, %v218
        %v222 = vunpack.c.l.s4 1966171168
        %v223 = vunpack.c.0.s8 %v222
        %v224 = vlaneseq
        %v225 = vshrl.u32 %v224, 7
        %v226 = vsub.s32 %v223, %v225
        %v227 = vrot.slane %v211, %v226
        %v229 = vunpack.c.l.s4 1966171168
        %v230 = vunpack.c.0.s8 %v229
        %v231 = vlaneseq
        %v232 = vshrl.u32 %v231, 7
        %v233 = vsub.s32 %v230, %v232
        %v234 = vrot.slane %v218, %v233
        %v236 = vunpack.c.l.s4 1966171168
        %v237 = vunpack.c.0.s8 %v236
        %v238 = vlaneseq
        %v239 = vshrl.u32 %v238, 7
        %v240 = vsub.s32 %v237, %v239
        %v241 = vrot.slane %v219, %v240
        %v243 = vunpack.c.l.s4 1966171168
        %v244 = vunpack.c.0.s8 %v243
        %v245 = vlaneseq
        %v246 = vshrl.u32 %v245, 7
        %v247 = vsub.s32 %v244, %v246
        %v248 = vrot.slane %v220, %v247
        %v249 = vcombine.high %v227, %v227
        %v250 = vcombine.high %v234, %v234
        %v251 = vcombine.high %v241, %v241
        %v252 = vcombine.high %v248, %v248
        %v253 = vlaneseq
        %v254 = vshrl.u32 %v253, 7
        %v255 = vsub.s32 0, %v254
        %v256 = vrot.slane %v227, %v255
        %v257 = vlaneseq
        %v258 = vshrl.u32 %v257, 7
        %v259 = vsub.s32 0, %v258
        %v260 = vrot.slane %v241, %v259
        %v261 = vlaneseq
        %v262 = vshrl.u32 %v261, 7
        %v263 = vsub.s32 0, %v262
        %v264 = vrot.slane %v249, %v263
        %v265 = vlaneseq
        %v266 = vshrl.u32 %v265, 7
        %v267 = vsub.s32 0, %v266
        %v268 = vrot.slane %v251, %v267
        %v269 = vlaneseq
        %v270 = vshrl.u32 %v269, 7
        %v271 = vsub.s32 0, %v270
        %v272 = vrot.slane %v234, %v271
        %v273 = vlaneseq
        %v274 = vshrl.u32 %v273, 7
        %v275 = vsub.s32 0, %v274
        %v276 = vrot.slane %v248, %v275
        %v277 = vlaneseq
        %v278 = vshrl.u32 %v277, 7
        %v279 = vsub.s32 0, %v278
        %v280 = vrot.slane %v250, %v279
        %v281 = vlaneseq
        %v282 = vshrl.u32 %v281, 7
        %v283 = vsub.s32 0, %v282
        %v284 = vrot.slane %v252, %v283
        %vm285 = vcmp.eq.s32.totalorder %v256, %v202
        %vm286 = vcmp.eq.s32.totalorder %v256, %v203
        %vm287 = vcmp.eq.s32.totalorder %v260, %v202
        %vm288 = vcmp.eq.s32.totalorder %v260, %v203
        %vm289 = vcmp.eq.s32.totalorder %v264, %v202
        %vm290 = vcmp.eq.s32.totalorder %v264, %v203
        %vm291 = vcmp.eq.s32.totalorder %v268, %v202
        %vm292 = vcmp.eq.s32.totalorder %v268, %v203
        %vm293 = vcmp.eq.s32.totalorder %v272, %v202
        %vm294 = vcmp.eq.s32.totalorder %v272, %v203
        %vm295 = vcmp.eq.s32.totalorder %v276, %v202
        %vm296 = vcmp.eq.s32.totalorder %v276, %v203
        %vm297 = vcmp.eq.s32.totalorder %v280, %v202
        %vm298 = vcmp.eq.s32.totalorder %v280, %v203
        %vm299 = vcmp.eq.s32.totalorder %v284, %v202
        %vm300 = vcmp.eq.s32.totalorder %v284, %v203
        %v301 = vsel %vm285, 1, 0
        %v302 = vsel %vm286, 1, 0
        %v303 = vsel %vm287, 1, 0
        %v304 = vsel %vm288, 1, 0
        %v305 = vsel %vm289, 1, 0
        %v306 = vsel %vm290, 1, 0
        %v307 = vsel %vm291, 1, 0
        %v308 = vsel %vm292, 1, 0
        %v309 = vsel %vm293, 1, 0
        %v310 = vsel %vm294, 1, 0
        %v311 = vsel %vm295, 1, 0
        %v312 = vsel %vm296, 1, 0
        %v313 = vsel %vm297, 1, 0
        %v314 = vsel %vm298, 1, 0
        %v315 = vsel %vm299, 1, 0
        %v316 = vsel %vm300, 1, 0
        %v317 = vcvt.s32.f32 %v301
        %v318 = vcvt.s32.f32 %v302
        %v319 = vcvt.s32.f32 %v303
        %v320 = vcvt.s32.f32 %v304
        %v321 = vcvt.s32.f32 %v305
        %v322 = vcvt.s32.f32 %v306
        %v323 = vcvt.s32.f32 %v307
        %v324 = vcvt.s32.f32 %v308
        %v325 = vcvt.s32.f32 %v309
        %v326 = vcvt.s32.f32 %v310
        %v327 = vcvt.s32.f32 %v311
        %v328 = vcvt.s32.f32 %v312
        %v329 = vcvt.s32.f32 %v313
        %v330 = vcvt.s32.f32 %v314
        %v331 = vcvt.s32.f32 %v315
        %v332 = vcvt.s32.f32 %v316
        %v333 = vpack.c.bf16 %v318, %v317
        %v334 = vpack.c.bf16 %v320, %v319
        %v335 = vpack.c.bf16 %v322, %v321
        %v336 = vpack.c.bf16 %v324, %v323
        %v337 = vpack.c.bf16 %v326, %v325
        %v338 = vpack.c.bf16 %v328, %v327
        %v339 = vpack.c.bf16 %v330, %v329
        %v340 = vpack.c.bf16 %v332, %v331
        %v341 = vlaneseq
        %v342 = vand.u32 %v341, 127
        %v343 = vlaneseq
        %v344 = vshrl.u32 %v343, 7
        %v345 = vsub.s32 0, %v344
        %v346 = vrot.slane %v200, %v345
        %348 = vbcast.lane.b32.xlu0 %v346, 256
        %v349 = vpop.permute.xlu0 %348
        %s351 = sor.u32 256, 8
        %352 = vbcast.lane.b32.xlu0 %v346, %s351
        %v353 = vpop.permute.xlu0 %352
        %s355 = sor.u32 256, 16
        %356 = vbcast.lane.b32.xlu0 %v346, %s355
        %v357 = vpop.permute.xlu0 %356
        %s359 = sor.u32 256, 24
        %360 = vbcast.lane.b32.xlu0 %v346, %s359
        %v361 = vpop.permute.xlu0 %360
        %s363 = sor.u32 256, 32
        %364 = vbcast.lane.b32.xlu0 %v346, %s363
        %v365 = vpop.permute.xlu0 %364
        %s367 = sor.u32 256, 40
        %368 = vbcast.lane.b32.xlu0 %v346, %s367
        %v369 = vpop.permute.xlu0 %368
        %s371 = sor.u32 256, 48
        %372 = vbcast.lane.b32.xlu0 %v346, %s371
        %v373 = vpop.permute.xlu0 %372
        %s375 = sor.u32 256, 56
        %376 = vbcast.lane.b32.xlu0 %v346, %s375
        %v377 = vpop.permute.xlu0 %376
        %s379 = sor.u32 256, 64
        %380 = vbcast.lane.b32.xlu0 %v346, %s379
        %v381 = vpop.permute.xlu0 %380
        %s383 = sor.u32 256, 72
        %384 = vbcast.lane.b32.xlu0 %v346, %s383
        %v385 = vpop.permute.xlu0 %384
        %s387 = sor.u32 256, 80
        %388 = vbcast.lane.b32.xlu0 %v346, %s387
        %v389 = vpop.permute.xlu0 %388
        %s391 = sor.u32 256, 88
        %392 = vbcast.lane.b32.xlu0 %v346, %s391
        %v393 = vpop.permute.xlu0 %392
        %s395 = sor.u32 256, 96
        %396 = vbcast.lane.b32.xlu0 %v346, %s395
        %v397 = vpop.permute.xlu0 %396
        %s399 = sor.u32 256, 104
        %400 = vbcast.lane.b32.xlu0 %v346, %s399
        %v401 = vpop.permute.xlu0 %400
        %s403 = sor.u32 256, 112
        %404 = vbcast.lane.b32.xlu0 %v346, %s403
        %v405 = vpop.permute.xlu0 %404
        %s407 = sor.u32 256, 120
        %408 = vbcast.lane.b32.xlu0 %v346, %s407
        %v409 = vpop.permute.xlu0 %408
        %v410 = vlaneseq
        %v411 = vshrl.u32 %v410, 7
        %v412 = vsub.s32 1, %v411
        %v413 = vrot.slane %v200, %v412
        %415 = vbcast.lane.b32.xlu0 %v413, 256
        %v416 = vpop.permute.xlu0 %415
        %s418 = sor.u32 256, 8
        %419 = vbcast.lane.b32.xlu0 %v413, %s418
        %v420 = vpop.permute.xlu0 %419
        %s422 = sor.u32 256, 16
        %423 = vbcast.lane.b32.xlu0 %v413, %s422
        %v424 = vpop.permute.xlu0 %423
        %s426 = sor.u32 256, 24
        %427 = vbcast.lane.b32.xlu0 %v413, %s426
        %v428 = vpop.permute.xlu0 %427
        %s430 = sor.u32 256, 32
        %431 = vbcast.lane.b32.xlu0 %v413, %s430
        %v432 = vpop.permute.xlu0 %431
        %s434 = sor.u32 256, 40
        %435 = vbcast.lane.b32.xlu0 %v413, %s434
        %v436 = vpop.permute.xlu0 %435
        %s438 = sor.u32 256, 48
        %439 = vbcast.lane.b32.xlu0 %v413, %s438
        %v440 = vpop.permute.xlu0 %439
        %s442 = sor.u32 256, 56
        %443 = vbcast.lane.b32.xlu0 %v413, %s442
        %v444 = vpop.permute.xlu0 %443
        %s446 = sor.u32 256, 64
        %447 = vbcast.lane.b32.xlu0 %v413, %s446
        %v448 = vpop.permute.xlu0 %447
        %s450 = sor.u32 256, 72
        %451 = vbcast.lane.b32.xlu0 %v413, %s450
        %v452 = vpop.permute.xlu0 %451
        %s454 = sor.u32 256, 80
        %455 = vbcast.lane.b32.xlu0 %v413, %s454
        %v456 = vpop.permute.xlu0 %455
        %s458 = sor.u32 256, 88
        %459 = vbcast.lane.b32.xlu0 %v413, %s458
        %v460 = vpop.permute.xlu0 %459
        %s462 = sor.u32 256, 96
        %463 = vbcast.lane.b32.xlu0 %v413, %s462
        %v464 = vpop.permute.xlu0 %463
        %s466 = sor.u32 256, 104
        %467 = vbcast.lane.b32.xlu0 %v413, %s466
        %v468 = vpop.permute.xlu0 %467
        %s470 = sor.u32 256, 112
        %471 = vbcast.lane.b32.xlu0 %v413, %s470
        %v472 = vpop.permute.xlu0 %471
        %s474 = sor.u32 256, 120
        %475 = vbcast.lane.b32.xlu0 %v413, %s474
        %v476 = vpop.permute.xlu0 %475
        %v477 = vlaneseq
        %v478 = vshrl.u32 %v477, 7
        %v479 = vsub.s32 2, %v478
        %v480 = vrot.slane %v200, %v479
        %482 = vbcast.lane.b32.xlu0 %v480, 256
        %v483 = vpop.permute.xlu0 %482
        %s485 = sor.u32 256, 8
        %486 = vbcast.lane.b32.xlu0 %v480, %s485
        %v487 = vpop.permute.xlu0 %486
        %s489 = sor.u32 256, 16
        %490 = vbcast.lane.b32.xlu0 %v480, %s489
        %v491 = vpop.permute.xlu0 %490
        %s493 = sor.u32 256, 24
        %494 = vbcast.lane.b32.xlu0 %v480, %s493
        %v495 = vpop.permute.xlu0 %494
        %s497 = sor.u32 256, 32
        %498 = vbcast.lane.b32.xlu0 %v480, %s497
        %v499 = vpop.permute.xlu0 %498
        %s501 = sor.u32 256, 40
        %502 = vbcast.lane.b32.xlu0 %v480, %s501
        %v503 = vpop.permute.xlu0 %502
        %s505 = sor.u32 256, 48
        %506 = vbcast.lane.b32.xlu0 %v480, %s505
        %v507 = vpop.permute.xlu0 %506
        %s509 = sor.u32 256, 56
        %510 = vbcast.lane.b32.xlu0 %v480, %s509
        %v511 = vpop.permute.xlu0 %510
        %s513 = sor.u32 256, 64
        %514 = vbcast.lane.b32.xlu0 %v480, %s513
        %v515 = vpop.permute.xlu0 %514
        %s517 = sor.u32 256, 72
        %518 = vbcast.lane.b32.xlu0 %v480, %s517
        %v519 = vpop.permute.xlu0 %518
        %s521 = sor.u32 256, 80
        %522 = vbcast.lane.b32.xlu0 %v480, %s521
        %v523 = vpop.permute.xlu0 %522
        %s525 = sor.u32 256, 88
        %526 = vbcast.lane.b32.xlu0 %v480, %s525
        %v527 = vpop.permute.xlu0 %526
        %s529 = sor.u32 256, 96
        %530 = vbcast.lane.b32.xlu0 %v480, %s529
        %v531 = vpop.permute.xlu0 %530
        %s533 = sor.u32 256, 104
        %534 = vbcast.lane.b32.xlu0 %v480, %s533
        %v535 = vpop.permute.xlu0 %534
        %s537 = sor.u32 256, 112
        %538 = vbcast.lane.b32.xlu0 %v480, %s537
        %v539 = vpop.permute.xlu0 %538
        %s541 = sor.u32 256, 120
        %542 = vbcast.lane.b32.xlu0 %v480, %s541
        %v543 = vpop.permute.xlu0 %542
        %v544 = vlaneseq
        %v545 = vshrl.u32 %v544, 7
        %v546 = vsub.s32 3, %v545
        %v547 = vrot.slane %v200, %v546
        %549 = vbcast.lane.b32.xlu0 %v547, 256
        %v550 = vpop.permute.xlu0 %549
        %s552 = sor.u32 256, 8
        %553 = vbcast.lane.b32.xlu0 %v547, %s552
        %v554 = vpop.permute.xlu0 %553
        %s556 = sor.u32 256, 16
        %557 = vbcast.lane.b32.xlu0 %v547, %s556
        %v558 = vpop.permute.xlu0 %557
        %s560 = sor.u32 256, 24
        %561 = vbcast.lane.b32.xlu0 %v547, %s560
        %v562 = vpop.permute.xlu0 %561
        %s564 = sor.u32 256, 32
        %565 = vbcast.lane.b32.xlu0 %v547, %s564
        %v566 = vpop.permute.xlu0 %565
        %s568 = sor.u32 256, 40
        %569 = vbcast.lane.b32.xlu0 %v547, %s568
        %v570 = vpop.permute.xlu0 %569
        %s572 = sor.u32 256, 48
        %573 = vbcast.lane.b32.xlu0 %v547, %s572
        %v574 = vpop.permute.xlu0 %573
        %s576 = sor.u32 256, 56
        %577 = vbcast.lane.b32.xlu0 %v547, %s576
        %v578 = vpop.permute.xlu0 %577
        %s580 = sor.u32 256, 64
        %581 = vbcast.lane.b32.xlu0 %v547, %s580
        %v582 = vpop.permute.xlu0 %581
        %s584 = sor.u32 256, 72
        %585 = vbcast.lane.b32.xlu0 %v547, %s584
        %v586 = vpop.permute.xlu0 %585
        %s588 = sor.u32 256, 80
        %589 = vbcast.lane.b32.xlu0 %v547, %s588
        %v590 = vpop.permute.xlu0 %589
        %s592 = sor.u32 256, 88
        %593 = vbcast.lane.b32.xlu0 %v547, %s592
        %v594 = vpop.permute.xlu0 %593
        %s596 = sor.u32 256, 96
        %597 = vbcast.lane.b32.xlu0 %v547, %s596
        %v598 = vpop.permute.xlu0 %597
        %s600 = sor.u32 256, 104
        %601 = vbcast.lane.b32.xlu0 %v547, %s600
        %v602 = vpop.permute.xlu0 %601
        %s604 = sor.u32 256, 112
        %605 = vbcast.lane.b32.xlu0 %v547, %s604
        %v606 = vpop.permute.xlu0 %605
        %s608 = sor.u32 256, 120
        %609 = vbcast.lane.b32.xlu0 %v547, %s608
        %v610 = vpop.permute.xlu0 %609
        %v611 = vlaneseq
        %v612 = vshrl.u32 %v611, 7
        %v613 = vsub.s32 4, %v612
        %v614 = vrot.slane %v200, %v613
        %616 = vbcast.lane.b32.xlu0 %v614, 256
        %v617 = vpop.permute.xlu0 %616
        %s619 = sor.u32 256, 8
        %620 = vbcast.lane.b32.xlu0 %v614, %s619
        %v621 = vpop.permute.xlu0 %620
        %s623 = sor.u32 256, 16
        %624 = vbcast.lane.b32.xlu0 %v614, %s623
        %v625 = vpop.permute.xlu0 %624
        %s627 = sor.u32 256, 24
        %628 = vbcast.lane.b32.xlu0 %v614, %s627
        %v629 = vpop.permute.xlu0 %628
        %s631 = sor.u32 256, 32
        %632 = vbcast.lane.b32.xlu0 %v614, %s631
        %v633 = vpop.permute.xlu0 %632
        %s635 = sor.u32 256, 40
        %636 = vbcast.lane.b32.xlu0 %v614, %s635
        %v637 = vpop.permute.xlu0 %636
        %s639 = sor.u32 256, 48
        %640 = vbcast.lane.b32.xlu0 %v614, %s639
        %v641 = vpop.permute.xlu0 %640
        %s643 = sor.u32 256, 56
        %644 = vbcast.lane.b32.xlu0 %v614, %s643
        %v645 = vpop.permute.xlu0 %644
        %s647 = sor.u32 256, 64
        %648 = vbcast.lane.b32.xlu0 %v614, %s647
        %v649 = vpop.permute.xlu0 %648
        %s651 = sor.u32 256, 72
        %652 = vbcast.lane.b32.xlu0 %v614, %s651
        %v653 = vpop.permute.xlu0 %652
        %s655 = sor.u32 256, 80
        %656 = vbcast.lane.b32.xlu0 %v614, %s655
        %v657 = vpop.permute.xlu0 %656
        %s659 = sor.u32 256, 88
        %660 = vbcast.lane.b32.xlu0 %v614, %s659
        %v661 = vpop.permute.xlu0 %660
        %s663 = sor.u32 256, 96
        %664 = vbcast.lane.b32.xlu0 %v614, %s663
        %v665 = vpop.permute.xlu0 %664
        %s667 = sor.u32 256, 104
        %668 = vbcast.lane.b32.xlu0 %v614, %s667
        %v669 = vpop.permute.xlu0 %668
        %s671 = sor.u32 256, 112
        %672 = vbcast.lane.b32.xlu0 %v614, %s671
        %v673 = vpop.permute.xlu0 %672
        %s675 = sor.u32 256, 120
        %676 = vbcast.lane.b32.xlu0 %v614, %s675
        %v677 = vpop.permute.xlu0 %676
        %v678 = vlaneseq
        %v679 = vshrl.u32 %v678, 7
        %v680 = vsub.s32 5, %v679
        %v681 = vrot.slane %v200, %v680
        %683 = vbcast.lane.b32.xlu0 %v681, 256
        %v684 = vpop.permute.xlu0 %683
        %s686 = sor.u32 256, 8
        %687 = vbcast.lane.b32.xlu0 %v681, %s686
        %v688 = vpop.permute.xlu0 %687
        %s690 = sor.u32 256, 16
        %691 = vbcast.lane.b32.xlu0 %v681, %s690
        %v692 = vpop.permute.xlu0 %691
        %s694 = sor.u32 256, 24
        %695 = vbcast.lane.b32.xlu0 %v681, %s694
        %v696 = vpop.permute.xlu0 %695
        %s698 = sor.u32 256, 32
        %699 = vbcast.lane.b32.xlu0 %v681, %s698
        %v700 = vpop.permute.xlu0 %699
        %s702 = sor.u32 256, 40
        %703 = vbcast.lane.b32.xlu0 %v681, %s702
        %v704 = vpop.permute.xlu0 %703
        %s706 = sor.u32 256, 48
        %707 = vbcast.lane.b32.xlu0 %v681, %s706
        %v708 = vpop.permute.xlu0 %707
        %s710 = sor.u32 256, 56
        %711 = vbcast.lane.b32.xlu0 %v681, %s710
        %v712 = vpop.permute.xlu0 %711
        %s714 = sor.u32 256, 64
        %715 = vbcast.lane.b32.xlu0 %v681, %s714
        %v716 = vpop.permute.xlu0 %715
        %s718 = sor.u32 256, 72
        %719 = vbcast.lane.b32.xlu0 %v681, %s718
        %v720 = vpop.permute.xlu0 %719
        %s722 = sor.u32 256, 80
        %723 = vbcast.lane.b32.xlu0 %v681, %s722
        %v724 = vpop.permute.xlu0 %723
        %s726 = sor.u32 256, 88
        %727 = vbcast.lane.b32.xlu0 %v681, %s726
        %v728 = vpop.permute.xlu0 %727
        %s730 = sor.u32 256, 96
        %731 = vbcast.lane.b32.xlu0 %v681, %s730
        %v732 = vpop.permute.xlu0 %731
        %s734 = sor.u32 256, 104
        %735 = vbcast.lane.b32.xlu0 %v681, %s734
        %v736 = vpop.permute.xlu0 %735
        %s738 = sor.u32 256, 112
        %739 = vbcast.lane.b32.xlu0 %v681, %s738
        %v740 = vpop.permute.xlu0 %739
        %s742 = sor.u32 256, 120
        %743 = vbcast.lane.b32.xlu0 %v681, %s742
        %v744 = vpop.permute.xlu0 %743
        %v745 = vlaneseq
        %v746 = vshrl.u32 %v745, 7
        %v747 = vsub.s32 6, %v746
        %v748 = vrot.slane %v200, %v747
        %750 = vbcast.lane.b32.xlu0 %v748, 256
        %v751 = vpop.permute.xlu0 %750
        %s753 = sor.u32 256, 8
        %754 = vbcast.lane.b32.xlu0 %v748, %s753
        %v755 = vpop.permute.xlu0 %754
        %s757 = sor.u32 256, 16
        %758 = vbcast.lane.b32.xlu0 %v748, %s757
        %v759 = vpop.permute.xlu0 %758
        %s761 = sor.u32 256, 24
        %762 = vbcast.lane.b32.xlu0 %v748, %s761
        %v763 = vpop.permute.xlu0 %762
        %s765 = sor.u32 256, 32
        %766 = vbcast.lane.b32.xlu0 %v748, %s765
        %v767 = vpop.permute.xlu0 %766
        %s769 = sor.u32 256, 40
        %770 = vbcast.lane.b32.xlu0 %v748, %s769
        %v771 = vpop.permute.xlu0 %770
        %s773 = sor.u32 256, 48
        %774 = vbcast.lane.b32.xlu0 %v748, %s773
        %v775 = vpop.permute.xlu0 %774
        %s777 = sor.u32 256, 56
        %778 = vbcast.lane.b32.xlu0 %v748, %s777
        %v779 = vpop.permute.xlu0 %778
        %s781 = sor.u32 256, 64
        %782 = vbcast.lane.b32.xlu0 %v748, %s781
        %v783 = vpop.permute.xlu0 %782
        %s785 = sor.u32 256, 72
        %786 = vbcast.lane.b32.xlu0 %v748, %s785
        %v787 = vpop.permute.xlu0 %786
        %s789 = sor.u32 256, 80
        %790 = vbcast.lane.b32.xlu0 %v748, %s789
        %v791 = vpop.permute.xlu0 %790
        %s793 = sor.u32 256, 88
        %794 = vbcast.lane.b32.xlu0 %v748, %s793
        %v795 = vpop.permute.xlu0 %794
        %s797 = sor.u32 256, 96
        %798 = vbcast.lane.b32.xlu0 %v748, %s797
        %v799 = vpop.permute.xlu0 %798
        %s801 = sor.u32 256, 104
        %802 = vbcast.lane.b32.xlu0 %v748, %s801
        %v803 = vpop.permute.xlu0 %802
        %s805 = sor.u32 256, 112
        %806 = vbcast.lane.b32.xlu0 %v748, %s805
        %v807 = vpop.permute.xlu0 %806
        %s809 = sor.u32 256, 120
        %810 = vbcast.lane.b32.xlu0 %v748, %s809
        %v811 = vpop.permute.xlu0 %810
        %v812 = vlaneseq
        %v813 = vshrl.u32 %v812, 7
        %v814 = vsub.s32 7, %v813
        %v815 = vrot.slane %v200, %v814
        %817 = vbcast.lane.b32.xlu0 %v815, 256
        %v818 = vpop.permute.xlu0 %817
        %s820 = sor.u32 256, 8
        %821 = vbcast.lane.b32.xlu0 %v815, %s820
        %v822 = vpop.permute.xlu0 %821
        %s824 = sor.u32 256, 16
        %825 = vbcast.lane.b32.xlu0 %v815, %s824
        %v826 = vpop.permute.xlu0 %825
        %s828 = sor.u32 256, 24
        %829 = vbcast.lane.b32.xlu0 %v815, %s828
        %v830 = vpop.permute.xlu0 %829
        %s832 = sor.u32 256, 32
        %833 = vbcast.lane.b32.xlu0 %v815, %s832
        %v834 = vpop.permute.xlu0 %833
        %s836 = sor.u32 256, 40
        %837 = vbcast.lane.b32.xlu0 %v815, %s836
        %v838 = vpop.permute.xlu0 %837
        %s840 = sor.u32 256, 48
        %841 = vbcast.lane.b32.xlu0 %v815, %s840
        %v842 = vpop.permute.xlu0 %841
        %s844 = sor.u32 256, 56
        %845 = vbcast.lane.b32.xlu0 %v815, %s844
        %v846 = vpop.permute.xlu0 %845
        %s848 = sor.u32 256, 64
        %849 = vbcast.lane.b32.xlu0 %v815, %s848
        %v850 = vpop.permute.xlu0 %849
        %s852 = sor.u32 256, 72
        %853 = vbcast.lane.b32.xlu0 %v815, %s852
        %v854 = vpop.permute.xlu0 %853
        %s856 = sor.u32 256, 80
        %857 = vbcast.lane.b32.xlu0 %v815, %s856
        %v858 = vpop.permute.xlu0 %857
        %s860 = sor.u32 256, 88
        %861 = vbcast.lane.b32.xlu0 %v815, %s860
        %v862 = vpop.permute.xlu0 %861
        %s864 = sor.u32 256, 96
        %865 = vbcast.lane.b32.xlu0 %v815, %s864
        %v866 = vpop.permute.xlu0 %865
        %s868 = sor.u32 256, 104
        %869 = vbcast.lane.b32.xlu0 %v815, %s868
        %v870 = vpop.permute.xlu0 %869
        %s872 = sor.u32 256, 112
        %873 = vbcast.lane.b32.xlu0 %v815, %s872
        %v874 = vpop.permute.xlu0 %873
        %s876 = sor.u32 256, 120
        %877 = vbcast.lane.b32.xlu0 %v815, %s876
        %v878 = vpop.permute.xlu0 %877
        %vm879 = vcmp.eq.s32.totalorder %v349, %v342
        %vm880 = vcmp.eq.s32.totalorder %v353, %v342
        %vm881 = vcmp.eq.s32.totalorder %v357, %v342
        %vm882 = vcmp.eq.s32.totalorder %v361, %v342
        %vm883 = vcmp.eq.s32.totalorder %v365, %v342
        %vm884 = vcmp.eq.s32.totalorder %v369, %v342
        %vm885 = vcmp.eq.s32.totalorder %v373, %v342
        %vm886 = vcmp.eq.s32.totalorder %v377, %v342
        %vm887 = vcmp.eq.s32.totalorder %v381, %v342
        %vm888 = vcmp.eq.s32.totalorder %v385, %v342
        %vm889 = vcmp.eq.s32.totalorder %v389, %v342
        %vm890 = vcmp.eq.s32.totalorder %v393, %v342
        %vm891 = vcmp.eq.s32.totalorder %v397, %v342
        %vm892 = vcmp.eq.s32.totalorder %v401, %v342
        %vm893 = vcmp.eq.s32.totalorder %v405, %v342
        %vm894 = vcmp.eq.s32.totalorder %v409, %v342
        %vm895 = vcmp.eq.s32.totalorder %v416, %v342
        %vm896 = vcmp.eq.s32.totalorder %v420, %v342
        %vm897 = vcmp.eq.s32.totalorder %v424, %v342
        %vm898 = vcmp.eq.s32.totalorder %v428, %v342
        %vm899 = vcmp.eq.s32.totalorder %v432, %v342
        %vm900 = vcmp.eq.s32.totalorder %v436, %v342
        %vm901 = vcmp.eq.s32.totalorder %v440, %v342
        %vm902 = vcmp.eq.s32.totalorder %v444, %v342
        %vm903 = vcmp.eq.s32.totalorder %v448, %v342
        %vm904 = vcmp.eq.s32.totalorder %v452, %v342
        %vm905 = vcmp.eq.s32.totalorder %v456, %v342
        %vm906 = vcmp.eq.s32.totalorder %v460, %v342
        %vm907 = vcmp.eq.s32.totalorder %v464, %v342
        %vm908 = vcmp.eq.s32.totalorder %v468, %v342
        %vm909 = vcmp.eq.s32.totalorder %v472, %v342
        %vm910 = vcmp.eq.s32.totalorder %v476, %v342
        %vm911 = vcmp.eq.s32.totalorder %v483, %v342
        %vm912 = vcmp.eq.s32.totalorder %v487, %v342
        %vm913 = vcmp.eq.s32.totalorder %v491, %v342
        %vm914 = vcmp.eq.s32.totalorder %v495, %v342
        %vm915 = vcmp.eq.s32.totalorder %v499, %v342
        %vm916 = vcmp.eq.s32.totalorder %v503, %v342
        %vm917 = vcmp.eq.s32.totalorder %v507, %v342
        %vm918 = vcmp.eq.s32.totalorder %v511, %v342
        %vm919 = vcmp.eq.s32.totalorder %v515, %v342
        %vm920 = vcmp.eq.s32.totalorder %v519, %v342
        %vm921 = vcmp.eq.s32.totalorder %v523, %v342
        %vm922 = vcmp.eq.s32.totalorder %v527, %v342
        %vm923 = vcmp.eq.s32.totalorder %v531, %v342
        %vm924 = vcmp.eq.s32.totalorder %v535, %v342
        %vm925 = vcmp.eq.s32.totalorder %v539, %v342
        %vm926 = vcmp.eq.s32.totalorder %v543, %v342
        %vm927 = vcmp.eq.s32.totalorder %v550, %v342
        %vm928 = vcmp.eq.s32.totalorder %v554, %v342
        %vm929 = vcmp.eq.s32.totalorder %v558, %v342
        %vm930 = vcmp.eq.s32.totalorder %v562, %v342
        %vm931 = vcmp.eq.s32.totalorder %v566, %v342
        %vm932 = vcmp.eq.s32.totalorder %v570, %v342
        %vm933 = vcmp.eq.s32.totalorder %v574, %v342
        %vm934 = vcmp.eq.s32.totalorder %v578, %v342
        %vm935 = vcmp.eq.s32.totalorder %v582, %v342
        %vm936 = vcmp.eq.s32.totalorder %v586, %v342
        %vm937 = vcmp.eq.s32.totalorder %v590, %v342
        %vm938 = vcmp.eq.s32.totalorder %v594, %v342
        %vm939 = vcmp.eq.s32.totalorder %v598, %v342
        %vm940 = vcmp.eq.s32.totalorder %v602, %v342
        %vm941 = vcmp.eq.s32.totalorder %v606, %v342
        %vm942 = vcmp.eq.s32.totalorder %v610, %v342
        %vm943 = vcmp.eq.s32.totalorder %v617, %v342
        %vm944 = vcmp.eq.s32.totalorder %v621, %v342
        %vm945 = vcmp.eq.s32.totalorder %v625, %v342
        %vm946 = vcmp.eq.s32.totalorder %v629, %v342
        %vm947 = vcmp.eq.s32.totalorder %v633, %v342
        %vm948 = vcmp.eq.s32.totalorder %v637, %v342
        %vm949 = vcmp.eq.s32.totalorder %v641, %v342
        %vm950 = vcmp.eq.s32.totalorder %v645, %v342
        %vm951 = vcmp.eq.s32.totalorder %v649, %v342
        %vm952 = vcmp.eq.s32.totalorder %v653, %v342
        %vm953 = vcmp.eq.s32.totalorder %v657, %v342
        %vm954 = vcmp.eq.s32.totalorder %v661, %v342
        %vm955 = vcmp.eq.s32.totalorder %v665, %v342
        %vm956 = vcmp.eq.s32.totalorder %v669, %v342
        %vm957 = vcmp.eq.s32.totalorder %v673, %v342
        %vm958 = vcmp.eq.s32.totalorder %v677, %v342
        %vm959 = vcmp.eq.s32.totalorder %v684, %v342
        %vm960 = vcmp.eq.s32.totalorder %v688, %v342
        %vm961 = vcmp.eq.s32.totalorder %v692, %v342
        %vm962 = vcmp.eq.s32.totalorder %v696, %v342
        %vm963 = vcmp.eq.s32.totalorder %v700, %v342
        %vm964 = vcmp.eq.s32.totalorder %v704, %v342
        %vm965 = vcmp.eq.s32.totalorder %v708, %v342
        %vm966 = vcmp.eq.s32.totalorder %v712, %v342
        %vm967 = vcmp.eq.s32.totalorder %v716, %v342
        %vm968 = vcmp.eq.s32.totalorder %v720, %v342
        %vm969 = vcmp.eq.s32.totalorder %v724, %v342
        %vm970 = vcmp.eq.s32.totalorder %v728, %v342
        %vm971 = vcmp.eq.s32.totalorder %v732, %v342
        %vm972 = vcmp.eq.s32.totalorder %v736, %v342
        %vm973 = vcmp.eq.s32.totalorder %v740, %v342
        %vm974 = vcmp.eq.s32.totalorder %v744, %v342
        %vm975 = vcmp.eq.s32.totalorder %v751, %v342
        %vm976 = vcmp.eq.s32.totalorder %v755, %v342
        %vm977 = vcmp.eq.s32.totalorder %v759, %v342
        %vm978 = vcmp.eq.s32.totalorder %v763, %v342
        %vm979 = vcmp.eq.s32.totalorder %v767, %v342
        %vm980 = vcmp.eq.s32.totalorder %v771, %v342
        %vm981 = vcmp.eq.s32.totalorder %v775, %v342
        %vm982 = vcmp.eq.s32.totalorder %v779, %v342
        %vm983 = vcmp.eq.s32.totalorder %v783, %v342
        %vm984 = vcmp.eq.s32.totalorder %v787, %v342
        %vm985 = vcmp.eq.s32.totalorder %v791, %v342
        %vm986 = vcmp.eq.s32.totalorder %v795, %v342
        %vm987 = vcmp.eq.s32.totalorder %v799, %v342
        %vm988 = vcmp.eq.s32.totalorder %v803, %v342
        %vm989 = vcmp.eq.s32.totalorder %v807, %v342
        %vm990 = vcmp.eq.s32.totalorder %v811, %v342
        %vm991 = vcmp.eq.s32.totalorder %v818, %v342
        %vm992 = vcmp.eq.s32.totalorder %v822, %v342
        %vm993 = vcmp.eq.s32.totalorder %v826, %v342
        %vm994 = vcmp.eq.s32.totalorder %v830, %v342
        %vm995 = vcmp.eq.s32.totalorder %v834, %v342
        %vm996 = vcmp.eq.s32.totalorder %v838, %v342
        %vm997 = vcmp.eq.s32.totalorder %v842, %v342
        %vm998 = vcmp.eq.s32.totalorder %v846, %v342
        %vm999 = vcmp.eq.s32.totalorder %v850, %v342
        %vm1000 = vcmp.eq.s32.totalorder %v854, %v342
        %vm1001 = vcmp.eq.s32.totalorder %v858, %v342
        %vm1002 = vcmp.eq.s32.totalorder %v862, %v342
        %vm1003 = vcmp.eq.s32.totalorder %v866, %v342
        %vm1004 = vcmp.eq.s32.totalorder %v870, %v342
        %vm1005 = vcmp.eq.s32.totalorder %v874, %v342
        %vm1006 = vcmp.eq.s32.totalorder %v878, %v342
        %v1007 = vsel %vm879, 1, 0
        %v1008 = vsel %vm880, 1, 0
        %v1009 = vsel %vm881, 1, 0
        %v1010 = vsel %vm882, 1, 0
        %v1011 = vsel %vm883, 1, 0
        %v1012 = vsel %vm884, 1, 0
        %v1013 = vsel %vm885, 1, 0
        %v1014 = vsel %vm886, 1, 0
        %v1015 = vsel %vm887, 1, 0
        %v1016 = vsel %vm888, 1, 0
        %v1017 = vsel %vm889, 1, 0
        %v1018 = vsel %vm890, 1, 0
        %v1019 = vsel %vm891, 1, 0
        %v1020 = vsel %vm892, 1, 0
        %v1021 = vsel %vm893, 1, 0
        %v1022 = vsel %vm894, 1, 0
        %v1023 = vsel %vm895, 1, 0
        %v1024 = vsel %vm896, 1, 0
        %v1025 = vsel %vm897, 1, 0
        %v1026 = vsel %vm898, 1, 0
        %v1027 = vsel %vm899, 1, 0
        %v1028 = vsel %vm900, 1, 0
        %v1029 = vsel %vm901, 1, 0
        %v1030 = vsel %vm902, 1, 0
        %v1031 = vsel %vm903, 1, 0
        %v1032 = vsel %vm904, 1, 0
        %v1033 = vsel %vm905, 1, 0
        %v1034 = vsel %vm906, 1, 0
        %v1035 = vsel %vm907, 1, 0
        %v1036 = vsel %vm908, 1, 0
        %v1037 = vsel %vm909, 1, 0
        %v1038 = vsel %vm910, 1, 0
        %v1039 = vsel %vm911, 1, 0
        %v1040 = vsel %vm912, 1, 0
        %v1041 = vsel %vm913, 1, 0
        %v1042 = vsel %vm914, 1, 0
        %v1043 = vsel %vm915, 1, 0
        %v1044 = vsel %vm916, 1, 0
        %v1045 = vsel %vm917, 1, 0
        %v1046 = vsel %vm918, 1, 0
        %v1047 = vsel %vm919, 1, 0
        %v1048 = vsel %vm920, 1, 0
        %v1049 = vsel %vm921, 1, 0
        %v1050 = vsel %vm922, 1, 0
        %v1051 = vsel %vm923, 1, 0
        %v1052 = vsel %vm924, 1, 0
        %v1053 = vsel %vm925, 1, 0
        %v1054 = vsel %vm926, 1, 0
        %v1055 = vsel %vm927, 1, 0
        %v1056 = vsel %vm928, 1, 0
        %v1057 = vsel %vm929, 1, 0
        %v1058 = vsel %vm930, 1, 0
        %v1059 = vsel %vm931, 1, 0
        %v1060 = vsel %vm932, 1, 0
        %v1061 = vsel %vm933, 1, 0
        %v1062 = vsel %vm934, 1, 0
        %v1063 = vsel %vm935, 1, 0
        %v1064 = vsel %vm936, 1, 0
        %v1065 = vsel %vm937, 1, 0
        %v1066 = vsel %vm938, 1, 0
        %v1067 = vsel %vm939, 1, 0
        %v1068 = vsel %vm940, 1, 0
        %v1069 = vsel %vm941, 1, 0
        %v1070 = vsel %vm942, 1, 0
        %v1071 = vsel %vm943, 1, 0
        %v1072 = vsel %vm944, 1, 0
        %v1073 = vsel %vm945, 1, 0
        %v1074 = vsel %vm946, 1, 0
        %v1075 = vsel %vm947, 1, 0
        %v1076 = vsel %vm948, 1, 0
        %v1077 = vsel %vm949, 1, 0
        %v1078 = vsel %vm950, 1, 0
        %v1079 = vsel %vm951, 1, 0
        %v1080 = vsel %vm952, 1, 0
        %v1081 = vsel %vm953, 1, 0
        %v1082 = vsel %vm954, 1, 0
        %v1083 = vsel %vm955, 1, 0
        %v1084 = vsel %vm956, 1, 0
        %v1085 = vsel %vm957, 1, 0
        %v1086 = vsel %vm958, 1, 0
        %v1087 = vsel %vm959, 1, 0
        %v1088 = vsel %vm960, 1, 0
        %v1089 = vsel %vm961, 1, 0
        %v1090 = vsel %vm962, 1, 0
        %v1091 = vsel %vm963, 1, 0
        %v1092 = vsel %vm964, 1, 0
        %v1093 = vsel %vm965, 1, 0
        %v1094 = vsel %vm966, 1, 0
        %v1095 = vsel %vm967, 1, 0
        %v1096 = vsel %vm968, 1, 0
        %v1097 = vsel %vm969, 1, 0
        %v1098 = vsel %vm970, 1, 0
        %v1099 = vsel %vm971, 1, 0
        %v1100 = vsel %vm972, 1, 0
        %v1101 = vsel %vm973, 1, 0
        %v1102 = vsel %vm974, 1, 0
        %v1103 = vsel %vm975, 1, 0
        %v1104 = vsel %vm976, 1, 0
        %v1105 = vsel %vm977, 1, 0
        %v1106 = vsel %vm978, 1, 0
        %v1107 = vsel %vm979, 1, 0
        %v1108 = vsel %vm980, 1, 0
        %v1109 = vsel %vm981, 1, 0
        %v1110 = vsel %vm982, 1, 0
        %v1111 = vsel %vm983, 1, 0
        %v1112 = vsel %vm984, 1, 0
        %v1113 = vsel %vm985, 1, 0
        %v1114 = vsel %vm986, 1, 0
        %v1115 = vsel %vm987, 1, 0
        %v1116 = vsel %vm988, 1, 0
        %v1117 = vsel %vm989, 1, 0
        %v1118 = vsel %vm990, 1, 0
        %v1119 = vsel %vm991, 1, 0
        %v1120 = vsel %vm992, 1, 0
        %v1121 = vsel %vm993, 1, 0
        %v1122 = vsel %vm994, 1, 0
        %v1123 = vsel %vm995, 1, 0
        %v1124 = vsel %vm996, 1, 0
        %v1125 = vsel %vm997, 1, 0
        %v1126 = vsel %vm998, 1, 0
        %v1127 = vsel %vm999, 1, 0
        %v1128 = vsel %vm1000, 1, 0
        %v1129 = vsel %vm1001, 1, 0
        %v1130 = vsel %vm1002, 1, 0
        %v1131 = vsel %vm1003, 1, 0
        %v1132 = vsel %vm1004, 1, 0
        %v1133 = vsel %vm1005, 1, 0
        %v1134 = vsel %vm1006, 1, 0
        %v1135 = vcvt.s32.f32 %v1007
        %v1136 = vcvt.s32.f32 %v1008
        %v1137 = vcvt.s32.f32 %v1009
        %v1138 = vcvt.s32.f32 %v1010
        %v1139 = vcvt.s32.f32 %v1011
        %v1140 = vcvt.s32.f32 %v1012
        %v1141 = vcvt.s32.f32 %v1013
        %v1142 = vcvt.s32.f32 %v1014
        %v1143 = vcvt.s32.f32 %v1015
        %v1144 = vcvt.s32.f32 %v1016
        %v1145 = vcvt.s32.f32 %v1017
        %v1146 = vcvt.s32.f32 %v1018
        %v1147 = vcvt.s32.f32 %v1019
        %v1148 = vcvt.s32.f32 %v1020
        %v1149 = vcvt.s32.f32 %v1021
        %v1150 = vcvt.s32.f32 %v1022
        %v1151 = vcvt.s32.f32 %v1023
        %v1152 = vcvt.s32.f32 %v1024
        %v1153 = vcvt.s32.f32 %v1025
        %v1154 = vcvt.s32.f32 %v1026
        %v1155 = vcvt.s32.f32 %v1027
        %v1156 = vcvt.s32.f32 %v1028
        %v1157 = vcvt.s32.f32 %v1029
        %v1158 = vcvt.s32.f32 %v1030
        %v1159 = vcvt.s32.f32 %v1031
        %v1160 = vcvt.s32.f32 %v1032
        %v1161 = vcvt.s32.f32 %v1033
        %v1162 = vcvt.s32.f32 %v1034
        %v1163 = vcvt.s32.f32 %v1035
        %v1164 = vcvt.s32.f32 %v1036
        %v1165 = vcvt.s32.f32 %v1037
        %v1166 = vcvt.s32.f32 %v1038
        %v1167 = vcvt.s32.f32 %v1039
        %v1168 = vcvt.s32.f32 %v1040
        %v1169 = vcvt.s32.f32 %v1041
        %v1170 = vcvt.s32.f32 %v1042
        %v1171 = vcvt.s32.f32 %v1043
        %v1172 = vcvt.s32.f32 %v1044
        %v1173 = vcvt.s32.f32 %v1045
        %v1174 = vcvt.s32.f32 %v1046
        %v1175 = vcvt.s32.f32 %v1047
        %v1176 = vcvt.s32.f32 %v1048
        %v1177 = vcvt.s32.f32 %v1049
        %v1178 = vcvt.s32.f32 %v1050
        %v1179 = vcvt.s32.f32 %v1051
        %v1180 = vcvt.s32.f32 %v1052
        %v1181 = vcvt.s32.f32 %v1053
        %v1182 = vcvt.s32.f32 %v1054
        %v1183 = vcvt.s32.f32 %v1055
        %v1184 = vcvt.s32.f32 %v1056
        %v1185 = vcvt.s32.f32 %v1057
        %v1186 = vcvt.s32.f32 %v1058
        %v1187 = vcvt.s32.f32 %v1059
        %v1188 = vcvt.s32.f32 %v1060
        %v1189 = vcvt.s32.f32 %v1061
        %v1190 = vcvt.s32.f32 %v1062
        %v1191 = vcvt.s32.f32 %v1063
        %v1192 = vcvt.s32.f32 %v1064
        %v1193 = vcvt.s32.f32 %v1065
        %v1194 = vcvt.s32.f32 %v1066
        %v1195 = vcvt.s32.f32 %v1067
        %v1196 = vcvt.s32.f32 %v1068
        %v1197 = vcvt.s32.f32 %v1069
        %v1198 = vcvt.s32.f32 %v1070
        %v1199 = vcvt.s32.f32 %v1071
        %v1200 = vcvt.s32.f32 %v1072
        %v1201 = vcvt.s32.f32 %v1073
        %v1202 = vcvt.s32.f32 %v1074
        %v1203 = vcvt.s32.f32 %v1075
        %v1204 = vcvt.s32.f32 %v1076
        %v1205 = vcvt.s32.f32 %v1077
        %v1206 = vcvt.s32.f32 %v1078
        %v1207 = vcvt.s32.f32 %v1079
        %v1208 = vcvt.s32.f32 %v1080
        %v1209 = vcvt.s32.f32 %v1081
        %v1210 = vcvt.s32.f32 %v1082
        %v1211 = vcvt.s32.f32 %v1083
        %v1212 = vcvt.s32.f32 %v1084
        %v1213 = vcvt.s32.f32 %v1085
        %v1214 = vcvt.s32.f32 %v1086
        %v1215 = vcvt.s32.f32 %v1087
        %v1216 = vcvt.s32.f32 %v1088
        %v1217 = vcvt.s32.f32 %v1089
        %v1218 = vcvt.s32.f32 %v1090
        %v1219 = vcvt.s32.f32 %v1091
        %v1220 = vcvt.s32.f32 %v1092
        %v1221 = vcvt.s32.f32 %v1093
        %v1222 = vcvt.s32.f32 %v1094
        %v1223 = vcvt.s32.f32 %v1095
        %v1224 = vcvt.s32.f32 %v1096
        %v1225 = vcvt.s32.f32 %v1097
        %v1226 = vcvt.s32.f32 %v1098
        %v1227 = vcvt.s32.f32 %v1099
        %v1228 = vcvt.s32.f32 %v1100
        %v1229 = vcvt.s32.f32 %v1101
        %v1230 = vcvt.s32.f32 %v1102
        %v1231 = vcvt.s32.f32 %v1103
        %v1232 = vcvt.s32.f32 %v1104
        %v1233 = vcvt.s32.f32 %v1105
        %v1234 = vcvt.s32.f32 %v1106
        %v1235 = vcvt.s32.f32 %v1107
        %v1236 = vcvt.s32.f32 %v1108
        %v1237 = vcvt.s32.f32 %v1109
        %v1238 = vcvt.s32.f32 %v1110
        %v1239 = vcvt.s32.f32 %v1111
        %v1240 = vcvt.s32.f32 %v1112
        %v1241 = vcvt.s32.f32 %v1113
        %v1242 = vcvt.s32.f32 %v1114
        %v1243 = vcvt.s32.f32 %v1115
        %v1244 = vcvt.s32.f32 %v1116
        %v1245 = vcvt.s32.f32 %v1117
        %v1246 = vcvt.s32.f32 %v1118
        %v1247 = vcvt.s32.f32 %v1119
        %v1248 = vcvt.s32.f32 %v1120
        %v1249 = vcvt.s32.f32 %v1121
        %v1250 = vcvt.s32.f32 %v1122
        %v1251 = vcvt.s32.f32 %v1123
        %v1252 = vcvt.s32.f32 %v1124
        %v1253 = vcvt.s32.f32 %v1125
        %v1254 = vcvt.s32.f32 %v1126
        %v1255 = vcvt.s32.f32 %v1127
        %v1256 = vcvt.s32.f32 %v1128
        %v1257 = vcvt.s32.f32 %v1129
        %v1258 = vcvt.s32.f32 %v1130
        %v1259 = vcvt.s32.f32 %v1131
        %v1260 = vcvt.s32.f32 %v1132
        %v1261 = vcvt.s32.f32 %v1133
        %v1262 = vcvt.s32.f32 %v1134
        %v1263 = vpack.c.bf16 %v1136, %v1135
        %v1264 = vpack.c.bf16 %v1138, %v1137
        %v1265 = vpack.c.bf16 %v1140, %v1139
        %v1266 = vpack.c.bf16 %v1142, %v1141
        %v1267 = vpack.c.bf16 %v1144, %v1143
        %v1268 = vpack.c.bf16 %v1146, %v1145
        %v1269 = vpack.c.bf16 %v1148, %v1147
        %v1270 = vpack.c.bf16 %v1150, %v1149
        %v1271 = vpack.c.bf16 %v1152, %v1151
        %v1272 = vpack.c.bf16 %v1154, %v1153
        %v1273 = vpack.c.bf16 %v1156, %v1155
        %v1274 = vpack.c.bf16 %v1158, %v1157
        %v1275 = vpack.c.bf16 %v1160, %v1159
        %v1276 = vpack.c.bf16 %v1162, %v1161
        %v1277 = vpack.c.bf16 %v1164, %v1163
        %v1278 = vpack.c.bf16 %v1166, %v1165
        %v1279 = vpack.c.bf16 %v1168, %v1167
        %v1280 = vpack.c.bf16 %v1170, %v1169
        %v1281 = vpack.c.bf16 %v1172, %v1171
        %v1282 = vpack.c.bf16 %v1174, %v1173
        %v1283 = vpack.c.bf16 %v1176, %v1175
        %v1284 = vpack.c.bf16 %v1178, %v1177
        %v1285 = vpack.c.bf16 %v1180, %v1179
        %v1286 = vpack.c.bf16 %v1182, %v1181
        %v1287 = vpack.c.bf16 %v1184, %v1183
        %v1288 = vpack.c.bf16 %v1186, %v1185
        %v1289 = vpack.c.bf16 %v1188, %v1187
        %v1290 = vpack.c.bf16 %v1190, %v1189
        %v1291 = vpack.c.bf16 %v1192, %v1191
        %v1292 = vpack.c.bf16 %v1194, %v1193
        %v1293 = vpack.c.bf16 %v1196, %v1195
        %v1294 = vpack.c.bf16 %v1198, %v1197
        %v1295 = vpack.c.bf16 %v1200, %v1199
        %v1296 = vpack.c.bf16 %v1202, %v1201
        %v1297 = vpack.c.bf16 %v1204, %v1203
        %v1298 = vpack.c.bf16 %v1206, %v1205
        %v1299 = vpack.c.bf16 %v1208, %v1207
        %v1300 = vpack.c.bf16 %v1210, %v1209
        %v1301 = vpack.c.bf16 %v1212, %v1211
        %v1302 = vpack.c.bf16 %v1214, %v1213
        %v1303 = vpack.c.bf16 %v1216, %v1215
        %v1304 = vpack.c.bf16 %v1218, %v1217
        %v1305 = vpack.c.bf16 %v1220, %v1219
        %v1306 = vpack.c.bf16 %v1222, %v1221
        %v1307 = vpack.c.bf16 %v1224, %v1223
        %v1308 = vpack.c.bf16 %v1226, %v1225
        %v1309 = vpack.c.bf16 %v1228, %v1227
        %v1310 = vpack.c.bf16 %v1230, %v1229
        %v1311 = vpack.c.bf16 %v1232, %v1231
        %v1312 = vpack.c.bf16 %v1234, %v1233
        %v1313 = vpack.c.bf16 %v1236, %v1235
        %v1314 = vpack.c.bf16 %v1238, %v1237
        %v1315 = vpack.c.bf16 %v1240, %v1239
        %v1316 = vpack.c.bf16 %v1242, %v1241
        %v1317 = vpack.c.bf16 %v1244, %v1243
        %v1318 = vpack.c.bf16 %v1246, %v1245
        %v1319 = vpack.c.bf16 %v1248, %v1247
        %v1320 = vpack.c.bf16 %v1250, %v1249
        %v1321 = vpack.c.bf16 %v1252, %v1251
        %v1322 = vpack.c.bf16 %v1254, %v1253
        %v1323 = vpack.c.bf16 %v1256, %v1255
        %v1324 = vpack.c.bf16 %v1258, %v1257
        %v1325 = vpack.c.bf16 %v1260, %v1259
        %v1326 = vpack.c.bf16 %v1262, %v1261
        %1327 = vmatprep.subr.bf16.mxu0 0
        %1328 = vmatpush1.bf16.msra.mxu0 %v1263
        %1329 = vmatprep.subr.bf16.mxu0 0
        %1330 = vmatpush1.bf16.msra.mxu0 %v1264
        %1331 = vmatprep.subr.bf16.mxu0 0
        %1332 = vmatpush1.bf16.msra.mxu0 %v1265
        %1333 = vmatprep.subr.bf16.mxu0 0
        %1334 = vmatpush1.bf16.msra.mxu0 %v1266
        %1335 = vmatprep.subr.bf16.mxu0 0
        %1336 = vmatpush1.bf16.msra.mxu0 %v1267
        %1337 = vmatprep.subr.bf16.mxu0 0
        %1338 = vmatpush1.bf16.msra.mxu0 %v1268
        %1339 = vmatprep.subr.bf16.mxu0 0
        %1340 = vmatpush1.bf16.msra.mxu0 %v1269
        %1341 = vmatprep.subr.bf16.mxu0 0
        %1342 = vmatpush1.bf16.msra.mxu0 %v1270
        %1343 = vmatprep.subr.bf16.mxu0 0
        %1344 = vmatpush1.bf16.msra.mxu0 0
        %1345 = vmatprep.subr.bf16.mxu0 0
        %1346 = vmatpush1.bf16.msra.mxu0 0
        %1347 = vmatprep.subr.bf16.mxu0 0
        %1348 = vmatpush1.bf16.msra.mxu0 0
        %1349 = vmatprep.subr.bf16.mxu0 0
        %1350 = vmatpush1.bf16.msra.mxu0 0
        %1351 = vmatprep.subr.bf16.mxu0 0
        %1352 = vmatpush1.bf16.msra.mxu0 0
        %1353 = vmatprep.subr.bf16.mxu0 0
        %1354 = vmatpush1.bf16.msra.mxu0 0
        %1355 = vmatprep.subr.bf16.mxu0 0
        %1356 = vmatpush1.bf16.msra.mxu0 0
        %1357 = vmatprep.subr.bf16.mxu0 0
        %1358 = vmatpush1.bf16.msra.mxu0 0
        %1359 = vmatprep.mubr.bf16.mxu0 0
        %1360 = vmatmul.mubr.bf16.gmra.mrb[0].mxu0 %v333
        %v1361 = vpop.f32.mrb[0].mxu0
        %v1362 = vadd.f32 0.0, %v1361
        %v1363 = vpop.f32.mrb[0].mxu0
        %v1364 = vpop.f32.mrb[0].mxu0
        %v1365 = vadd.f32 0.0, %v1364
        %v1366 = vpop.f32.mrb[0].mxu0
        %1367 = vdwg.mxu0
        %1368 = vmatprep.subr.bf16.mxu0 0
        %1369 = vmatpush1.bf16.msra.mxu0 %v1271
        %1370 = vmatprep.subr.bf16.mxu0 0
        %1371 = vmatpush1.bf16.msra.mxu0 %v1272
        %1372 = vmatprep.subr.bf16.mxu0 0
        %1373 = vmatpush1.bf16.msra.mxu0 %v1273
        %1374 = vmatprep.subr.bf16.mxu0 0
        %1375 = vmatpush1.bf16.msra.mxu0 %v1274
        %1376 = vmatprep.subr.bf16.mxu0 0
        %1377 = vmatpush1.bf16.msra.mxu0 %v1275
        %1378 = vmatprep.subr.bf16.mxu0 0
        %1379 = vmatpush1.bf16.msra.mxu0 %v1276
        %1380 = vmatprep.subr.bf16.mxu0 0
        %1381 = vmatpush1.bf16.msra.mxu0 %v1277
        %1382 = vmatprep.subr.bf16.mxu0 0
        %1383 = vmatpush1.bf16.msra.mxu0 %v1278
        %1384 = vmatprep.subr.bf16.mxu0 0
        %1385 = vmatpush1.bf16.msra.mxu0 0
        %1386 = vmatprep.subr.bf16.mxu0 0
        %1387 = vmatpush1.bf16.msra.mxu0 0
        %1388 = vmatprep.subr.bf16.mxu0 0
        %1389 = vmatpush1.bf16.msra.mxu0 0
        %1390 = vmatprep.subr.bf16.mxu0 0
        %1391 = vmatpush1.bf16.msra.mxu0 0
        %1392 = vmatprep.subr.bf16.mxu0 0
        %1393 = vmatpush1.bf16.msra.mxu0 0
        %1394 = vmatprep.subr.bf16.mxu0 0
        %1395 = vmatpush1.bf16.msra.mxu0 0
        %1396 = vmatprep.subr.bf16.mxu0 0
        %1397 = vmatpush1.bf16.msra.mxu0 0
        %1398 = vmatprep.subr.bf16.mxu0 0
        %1399 = vmatpush1.bf16.msra.mxu0 0
        %1400 = vmatprep.mubr.bf16.mxu0 0
        %1401 = vmatmul.mubr.bf16.gmra.mrb[0].mxu0 %v334
        %v1402 = vpop.f32.mrb[0].mxu0
        %v1403 = vadd.f32 0.0, %v1402
        %v1404 = vpop.f32.mrb[0].mxu0
        %v1405 = vpop.f32.mrb[0].mxu0
        %v1406 = vadd.f32 0.0, %v1405
        %v1407 = vpop.f32.mrb[0].mxu0
        %1408 = vdwg.mxu0
        %1409 = vmatprep.subr.bf16.mxu0 0
        %1410 = vmatpush1.bf16.msra.mxu0 %v1279
        %1411 = vmatprep.subr.bf16.mxu0 0
        %1412 = vmatpush1.bf16.msra.mxu0 %v1280
        %1413 = vmatprep.subr.bf16.mxu0 0
        %1414 = vmatpush1.bf16.msra.mxu0 %v1281
        %1415 = vmatprep.subr.bf16.mxu0 0
        %1416 = vmatpush1.bf16.msra.mxu0 %v1282
        %1417 = vmatprep.subr.bf16.mxu0 0
        %1418 = vmatpush1.bf16.msra.mxu0 %v1283
        %1419 = vmatprep.subr.bf16.mxu0 0
        %1420 = vmatpush1.bf16.msra.mxu0 %v1284
        %1421 = vmatprep.subr.bf16.mxu0 0
        %1422 = vmatpush1.bf16.msra.mxu0 %v1285
        %1423 = vmatprep.subr.bf16.mxu0 0
        %1424 = vmatpush1.bf16.msra.mxu0 %v1286
        %1425 = vmatprep.subr.bf16.mxu0 0
        %1426 = vmatpush1.bf16.msra.mxu0 0
        %1427 = vmatprep.subr.bf16.mxu0 0
        %1428 = vmatpush1.bf16.msra.mxu0 0
        %1429 = vmatprep.subr.bf16.mxu0 0
        %1430 = vmatpush1.bf16.msra.mxu0 0
        %1431 = vmatprep.subr.bf16.mxu0 0
        %1432 = vmatpush1.bf16.msra.mxu0 0
        %1433 = vmatprep.subr.bf16.mxu0 0
        %1434 = vmatpush1.bf16.msra.mxu0 0
        %1435 = vmatprep.subr.bf16.mxu0 0
        %1436 = vmatpush1.bf16.msra.mxu0 0
        %1437 = vmatprep.subr.bf16.mxu0 0
        %1438 = vmatpush1.bf16.msra.mxu0 0
        %1439 = vmatprep.subr.bf16.mxu0 0
        %1440 = vmatpush1.bf16.msra.mxu0 0
        %1441 = vmatprep.mubr.bf16.mxu0 0
        %1442 = vmatmul.mubr.bf16.gmra.mrb[0].mxu0 %v335
        %v1443 = vpop.f32.mrb[0].mxu0
        %v1444 = vadd.f32 0.0, %v1443
        %v1445 = vpop.f32.mrb[0].mxu0
        %v1446 = vpop.f32.mrb[0].mxu0
        %v1447 = vadd.f32 0.0, %v1446
        %v1448 = vpop.f32.mrb[0].mxu0
        %1449 = vdwg.mxu0
        %1450 = vmatprep.subr.bf16.mxu0 0
        %1451 = vmatpush1.bf16.msra.mxu0 %v1287
        %1452 = vmatprep.subr.bf16.mxu0 0
        %1453 = vmatpush1.bf16.msra.mxu0 %v1288
        %1454 = vmatprep.subr.bf16.mxu0 0
        %1455 = vmatpush1.bf16.msra.mxu0 %v1289
        %1456 = vmatprep.subr.bf16.mxu0 0
        %1457 = vmatpush1.bf16.msra.mxu0 %v1290
        %1458 = vmatprep.subr.bf16.mxu0 0
        %1459 = vmatpush1.bf16.msra.mxu0 %v1291
        %1460 = vmatprep.subr.bf16.mxu0 0
        %1461 = vmatpush1.bf16.msra.mxu0 %v1292
        %1462 = vmatprep.subr.bf16.mxu0 0
        %1463 = vmatpush1.bf16.msra.mxu0 %v1293
        %1464 = vmatprep.subr.bf16.mxu0 0
        %1465 = vmatpush1.bf16.msra.mxu0 %v1294
        %1466 = vmatprep.subr.bf16.mxu0 0
        %1467 = vmatpush1.bf16.msra.mxu0 0
        %1468 = vmatprep.subr.bf16.mxu0 0
        %1469 = vmatpush1.bf16.msra.mxu0 0
        %1470 = vmatprep.subr.bf16.mxu0 0
        %1471 = vmatpush1.bf16.msra.mxu0 0
        %1472 = vmatprep.subr.bf16.mxu0 0
        %1473 = vmatpush1.bf16.msra.mxu0 0
        %1474 = vmatprep.subr.bf16.mxu0 0
        %1475 = vmatpush1.bf16.msra.mxu0 0
        %1476 = vmatprep.subr.bf16.mxu0 0
        %1477 = vmatpush1.bf16.msra.mxu0 0
        %1478 = vmatprep.subr.bf16.mxu0 0
        %1479 = vmatpush1.bf16.msra.mxu0 0
        %1480 = vmatprep.subr.bf16.mxu0 0
        %1481 = vmatpush1.bf16.msra.mxu0 0
        %1482 = vmatprep.mubr.bf16.mxu0 0
        %1483 = vmatmul.mubr.bf16.gmra.mrb[0].mxu0 %v336
        %v1484 = vpop.f32.mrb[0].mxu0
        %v1485 = vadd.f32 0.0, %v1484
        %v1486 = vpop.f32.mrb[0].mxu0
        %v1487 = vpop.f32.mrb[0].mxu0
        %v1488 = vadd.f32 0.0, %v1487
        %v1489 = vpop.f32.mrb[0].mxu0
        %1490 = vdwg.mxu0
        %1491 = vmatprep.subr.bf16.mxu0 0
        %1492 = vmatpush1.bf16.msra.mxu0 %v1295
        %1493 = vmatprep.subr.bf16.mxu0 0
        %1494 = vmatpush1.bf16.msra.mxu0 %v1296
        %1495 = vmatprep.subr.bf16.mxu0 0
        %1496 = vmatpush1.bf16.msra.mxu0 %v1297
        %1497 = vmatprep.subr.bf16.mxu0 0
        %1498 = vmatpush1.bf16.msra.mxu0 %v1298
        %1499 = vmatprep.subr.bf16.mxu0 0
        %1500 = vmatpush1.bf16.msra.mxu0 %v1299
        %1501 = vmatprep.subr.bf16.mxu0 0
        %1502 = vmatpush1.bf16.msra.mxu0 %v1300
        %1503 = vmatprep.subr.bf16.mxu0 0
        %1504 = vmatpush1.bf16.msra.mxu0 %v1301
        %1505 = vmatprep.subr.bf16.mxu0 0
        %1506 = vmatpush1.bf16.msra.mxu0 %v1302
        %1507 = vmatprep.subr.bf16.mxu0 0
        %1508 = vmatpush1.bf16.msra.mxu0 0
        %1509 = vmatprep.subr.bf16.mxu0 0
        %1510 = vmatpush1.bf16.msra.mxu0 0
        %1511 = vmatprep.subr.bf16.mxu0 0
        %1512 = vmatpush1.bf16.msra.mxu0 0
        %1513 = vmatprep.subr.bf16.mxu0 0
        %1514 = vmatpush1.bf16.msra.mxu0 0
        %1515 = vmatprep.subr.bf16.mxu0 0
        %1516 = vmatpush1.bf16.msra.mxu0 0
        %1517 = vmatprep.subr.bf16.mxu0 0
        %1518 = vmatpush1.bf16.msra.mxu0 0
        %1519 = vmatprep.subr.bf16.mxu0 0
        %1520 = vmatpush1.bf16.msra.mxu0 0
        %1521 = vmatprep.subr.bf16.mxu0 0
        %1522 = vmatpush1.bf16.msra.mxu0 0
        %1523 = vmatprep.mubr.bf16.mxu0 0
        %1524 = vmatmul.mubr.bf16.gmra.mrb[0].mxu0 %v337
        %v1525 = vpop.f32.mrb[0].mxu0
        %v1526 = vadd.f32 0.0, %v1525
        %v1527 = vpop.f32.mrb[0].mxu0
        %v1528 = vpop.f32.mrb[0].mxu0
        %v1529 = vadd.f32 0.0, %v1528
        %v1530 = vpop.f32.mrb[0].mxu0
        %1531 = vdwg.mxu0
        %1532 = vmatprep.subr.bf16.mxu0 0
        %1533 = vmatpush1.bf16.msra.mxu0 %v1303
        %1534 = vmatprep.subr.bf16.mxu0 0
        %1535 = vmatpush1.bf16.msra.mxu0 %v1304
        %1536 = vmatprep.subr.bf16.mxu0 0
        %1537 = vmatpush1.bf16.msra.mxu0 %v1305
        %1538 = vmatprep.subr.bf16.mxu0 0
        %1539 = vmatpush1.bf16.msra.mxu0 %v1306
        %1540 = vmatprep.subr.bf16.mxu0 0
        %1541 = vmatpush1.bf16.msra.mxu0 %v1307
        %1542 = vmatprep.subr.bf16.mxu0 0
        %1543 = vmatpush1.bf16.msra.mxu0 %v1308
        %1544 = vmatprep.subr.bf16.mxu0 0
        %1545 = vmatpush1.bf16.msra.mxu0 %v1309
        %1546 = vmatprep.subr.bf16.mxu0 0
        %1547 = vmatpush1.bf16.msra.mxu0 %v1310
        %1548 = vmatprep.subr.bf16.mxu0 0
        %1549 = vmatpush1.bf16.msra.mxu0 0
        %1550 = vmatprep.subr.bf16.mxu0 0
        %1551 = vmatpush1.bf16.msra.mxu0 0
        %1552 = vmatprep.subr.bf16.mxu0 0
        %1553 = vmatpush1.bf16.msra.mxu0 0
        %1554 = vmatprep.subr.bf16.mxu0 0
        %1555 = vmatpush1.bf16.msra.mxu0 0
        %1556 = vmatprep.subr.bf16.mxu0 0
        %1557 = vmatpush1.bf16.msra.mxu0 0
        %1558 = vmatprep.subr.bf16.mxu0 0
        %1559 = vmatpush1.bf16.msra.mxu0 0
        %1560 = vmatprep.subr.bf16.mxu0 0
        %1561 = vmatpush1.bf16.msra.mxu0 0
        %1562 = vmatprep.subr.bf16.mxu0 0
        %1563 = vmatpush1.bf16.msra.mxu0 0
        %1564 = vmatprep.mubr.bf16.mxu0 0
        %1565 = vmatmul.mubr.bf16.gmra.mrb[0].mxu0 %v338
        %v1566 = vpop.f32.mrb[0].mxu0
        %v1567 = vadd.f32 0.0, %v1566
        %v1568 = vpop.f32.mrb[0].mxu0
        %v1569 = vpop.f32.mrb[0].mxu0
        %v1570 = vadd.f32 0.0, %v1569
        %v1571 = vpop.f32.mrb[0].mxu0
        %1572 = vdwg.mxu0
        %1573 = vmatprep.subr.bf16.mxu0 0
        %1574 = vmatpush1.bf16.msra.mxu0 %v1311
        %1575 = vmatprep.subr.bf16.mxu0 0
        %1576 = vmatpush1.bf16.msra.mxu0 %v1312
        %1577 = vmatprep.subr.bf16.mxu0 0
        %1578 = vmatpush1.bf16.msra.mxu0 %v1313
        %1579 = vmatprep.subr.bf16.mxu0 0
        %1580 = vmatpush1.bf16.msra.mxu0 %v1314
        %1581 = vmatprep.subr.bf16.mxu0 0
        %1582 = vmatpush1.bf16.msra.mxu0 %v1315
        %1583 = vmatprep.subr.bf16.mxu0 0
        %1584 = vmatpush1.bf16.msra.mxu0 %v1316
        %1585 = vmatprep.subr.bf16.mxu0 0
        %1586 = vmatpush1.bf16.msra.mxu0 %v1317
        %1587 = vmatprep.subr.bf16.mxu0 0
        %1588 = vmatpush1.bf16.msra.mxu0 %v1318
        %1589 = vmatprep.subr.bf16.mxu0 0
        %1590 = vmatpush1.bf16.msra.mxu0 0
        %1591 = vmatprep.subr.bf16.mxu0 0
        %1592 = vmatpush1.bf16.msra.mxu0 0
        %1593 = vmatprep.subr.bf16.mxu0 0
        %1594 = vmatpush1.bf16.msra.mxu0 0
        %1595 = vmatprep.subr.bf16.mxu0 0
        %1596 = vmatpush1.bf16.msra.mxu0 0
        %1597 = vmatprep.subr.bf16.mxu0 0
        %1598 = vmatpush1.bf16.msra.mxu0 0
        %1599 = vmatprep.subr.bf16.mxu0 0
        %1600 = vmatpush1.bf16.msra.mxu0 0
        %1601 = vmatprep.subr.bf16.mxu0 0
        %1602 = vmatpush1.bf16.msra.mxu0 0
        %1603 = vmatprep.subr.bf16.mxu0 0
        %1604 = vmatpush1.bf16.msra.mxu0 0
        %1605 = vmatprep.mubr.bf16.mxu0 0
        %1606 = vmatmul.mubr.bf16.gmra.mrb[0].mxu0 %v339
        %v1607 = vpop.f32.mrb[0].mxu0
        %v1608 = vadd.f32 0.0, %v1607
        %v1609 = vpop.f32.mrb[0].mxu0
        %v1610 = vpop.f32.mrb[0].mxu0
        %v1611 = vadd.f32 0.0, %v1610
        %v1612 = vpop.f32.mrb[0].mxu0
        %1613 = vdwg.mxu0
        %1614 = vmatprep.subr.bf16.mxu0 0
        %1615 = vmatpush1.bf16.msra.mxu0 %v1319
        %1616 = vmatprep.subr.bf16.mxu0 0
        %1617 = vmatpush1.bf16.msra.mxu0 %v1320
        %1618 = vmatprep.subr.bf16.mxu0 0
        %1619 = vmatpush1.bf16.msra.mxu0 %v1321
        %1620 = vmatprep.subr.bf16.mxu0 0
        %1621 = vmatpush1.bf16.msra.mxu0 %v1322
        %1622 = vmatprep.subr.bf16.mxu0 0
        %1623 = vmatpush1.bf16.msra.mxu0 %v1323
        %1624 = vmatprep.subr.bf16.mxu0 0
        %1625 = vmatpush1.bf16.msra.mxu0 %v1324
        %1626 = vmatprep.subr.bf16.mxu0 0
        %1627 = vmatpush1.bf16.msra.mxu0 %v1325
        %1628 = vmatprep.subr.bf16.mxu0 0
        %1629 = vmatpush1.bf16.msra.mxu0 %v1326
        %1630 = vmatprep.subr.bf16.mxu0 0
        %1631 = vmatpush1.bf16.msra.mxu0 0
        %1632 = vmatprep.subr.bf16.mxu0 0
        %1633 = vmatpush1.bf16.msra.mxu0 0
        %1634 = vmatprep.subr.bf16.mxu0 0
        %1635 = vmatpush1.bf16.msra.mxu0 0
        %1636 = vmatprep.subr.bf16.mxu0 0
        %1637 = vmatpush1.bf16.msra.mxu0 0
        %1638 = vmatprep.subr.bf16.mxu0 0
        %1639 = vmatpush1.bf16.msra.mxu0 0
        %1640 = vmatprep.subr.bf16.mxu0 0
        %1641 = vmatpush1.bf16.msra.mxu0 0
        %1642 = vmatprep.subr.bf16.mxu0 0
        %1643 = vmatpush1.bf16.msra.mxu0 0
        %1644 = vmatprep.subr.bf16.mxu0 0
        %1645 = vmatpush1.bf16.msra.mxu0 0
        %1646 = vmatprep.mubr.bf16.mxu0 0
        %1647 = vmatmul.mubr.bf16.gmra.mrb[0].mxu0 %v340
        %v1648 = vpop.f32.mrb[0].mxu0
        %v1649 = vadd.f32 0.0, %v1648
        %v1650 = vpop.f32.mrb[0].mxu0
        %v1651 = vpop.f32.mrb[0].mxu0
        %v1652 = vadd.f32 0.0, %v1651
        %v1653 = vpop.f32.mrb[0].mxu0
        %1654 = vdwg.mxu0
        %v1655 = vcombine.low %v1362, %v1444
        %v1656 = vcombine.high %v1362, %v1444
        %v1658 = vunpack.c.l.s4 1983009808
        %v1659 = vunpack.c.0.s8 %v1658
        %v1660 = vlaneseq
        %v1661 = vshrl.u32 %v1660, 7
        %v1662 = vsub.s32 %v1659, %v1661
        %v1663 = vrot.slane %v1655, %v1662
        %v1665 = vunpack.c.l.s4 1983009808
        %v1666 = vunpack.c.0.s8 %v1665
        %v1667 = vlaneseq
        %v1668 = vshrl.u32 %v1667, 7
        %v1669 = vsub.s32 %v1666, %v1668
        %v1670 = vrot.slane %v1656, %v1669
        %v1671 = vcombine.low %v1403, %v1485
        %v1672 = vcombine.high %v1403, %v1485
        %v1674 = vunpack.c.l.s4 1983009808
        %v1675 = vunpack.c.0.s8 %v1674
        %v1676 = vlaneseq
        %v1677 = vshrl.u32 %v1676, 7
        %v1678 = vsub.s32 %v1675, %v1677
        %v1679 = vrot.slane %v1671, %v1678
        %v1681 = vunpack.c.l.s4 1983009808
        %v1682 = vunpack.c.0.s8 %v1681
        %v1683 = vlaneseq
        %v1684 = vshrl.u32 %v1683, 7
        %v1685 = vsub.s32 %v1682, %v1684
        %v1686 = vrot.slane %v1672, %v1685
        %v1687 = vcombine.low %v1526, %v1608
        %v1688 = vcombine.high %v1526, %v1608
        %v1690 = vunpack.c.l.s4 1983009808
        %v1691 = vunpack.c.0.s8 %v1690
        %v1692 = vlaneseq
        %v1693 = vshrl.u32 %v1692, 7
        %v1694 = vsub.s32 %v1691, %v1693
        %v1695 = vrot.slane %v1687, %v1694
        %v1697 = vunpack.c.l.s4 1983009808
        %v1698 = vunpack.c.0.s8 %v1697
        %v1699 = vlaneseq
        %v1700 = vshrl.u32 %v1699, 7
        %v1701 = vsub.s32 %v1698, %v1700
        %v1702 = vrot.slane %v1688, %v1701
        %v1703 = vcombine.low %v1567, %v1649
        %v1704 = vcombine.high %v1567, %v1649
        %v1706 = vunpack.c.l.s4 1983009808
        %v1707 = vunpack.c.0.s8 %v1706
        %v1708 = vlaneseq
        %v1709 = vshrl.u32 %v1708, 7
        %v1710 = vsub.s32 %v1707, %v1709
        %v1711 = vrot.slane %v1703, %v1710
        %v1713 = vunpack.c.l.s4 1983009808
        %v1714 = vunpack.c.0.s8 %v1713
        %v1715 = vlaneseq
        %v1716 = vshrl.u32 %v1715, 7
        %v1717 = vsub.s32 %v1714, %v1716
        %v1718 = vrot.slane %v1704, %v1717
        %v1719 = vcombine.low %v1663, %v1679
        %v1720 = vcombine.high %v1663, %v1679
        %v1722 = vunpack.c.l.s4 1934713408
        %v1723 = vunpack.c.0.s8 %v1722
        %v1724 = vlaneseq
        %v1725 = vshrl.u32 %v1724, 7
        %v1726 = vsub.s32 %v1723, %v1725
        %v1727 = vrot.slane %v1719, %v1726
        %v1729 = vunpack.c.l.s4 1934713408
        %v1730 = vunpack.c.0.s8 %v1729
        %v1731 = vlaneseq
        %v1732 = vshrl.u32 %v1731, 7
        %v1733 = vsub.s32 %v1730, %v1732
        %v1734 = vrot.slane %v1720, %v1733
        %v1735 = vcombine.low %v1670, %v1686
        %v1736 = vcombine.high %v1670, %v1686
        %v1738 = vunpack.c.l.s4 1934713408
        %v1739 = vunpack.c.0.s8 %v1738
        %v1740 = vlaneseq
        %v1741 = vshrl.u32 %v1740, 7
        %v1742 = vsub.s32 %v1739, %v1741
        %v1743 = vrot.slane %v1735, %v1742
        %v1745 = vunpack.c.l.s4 1934713408
        %v1746 = vunpack.c.0.s8 %v1745
        %v1747 = vlaneseq
        %v1748 = vshrl.u32 %v1747, 7
        %v1749 = vsub.s32 %v1746, %v1748
        %v1750 = vrot.slane %v1736, %v1749
        %v1751 = vcombine.low %v1695, %v1711
        %v1752 = vcombine.high %v1695, %v1711
        %v1754 = vunpack.c.l.s4 1934713408
        %v1755 = vunpack.c.0.s8 %v1754
        %v1756 = vlaneseq
        %v1757 = vshrl.u32 %v1756, 7
        %v1758 = vsub.s32 %v1755, %v1757
        %v1759 = vrot.slane %v1751, %v1758
        %v1761 = vunpack.c.l.s4 1934713408
        %v1762 = vunpack.c.0.s8 %v1761
        %v1763 = vlaneseq
        %v1764 = vshrl.u32 %v1763, 7
        %v1765 = vsub.s32 %v1762, %v1764
        %v1766 = vrot.slane %v1752, %v1765
        %v1767 = vcombine.low %v1702, %v1718
        %v1768 = vcombine.high %v1702, %v1718
        %v1770 = vunpack.c.l.s4 1934713408
        %v1771 = vunpack.c.0.s8 %v1770
        %v1772 = vlaneseq
        %v1773 = vshrl.u32 %v1772, 7
        %v1774 = vsub.s32 %v1771, %v1773
        %v1775 = vrot.slane %v1767, %v1774
        %v1777 = vunpack.c.l.s4 1934713408
        %v1778 = vunpack.c.0.s8 %v1777
        %v1779 = vlaneseq
        %v1780 = vshrl.u32 %v1779, 7
        %v1781 = vsub.s32 %v1778, %v1780
        %v1782 = vrot.slane %v1768, %v1781
        %v1783 = vcombine.low %v1727, %v1759
        %v1784 = vcombine.high %v1727, %v1759
        %v1785 = vcombine.low %v1734, %v1766
        %v1786 = vcombine.high %v1734, %v1766
        %v1787 = vcombine.low %v1743, %v1775
        %v1788 = vcombine.high %v1743, %v1775
        %v1789 = vcombine.low %v1750, %v1782
        %v1790 = vcombine.high %v1750, %v1782
        %v1791 = vcombine.low %v1365, %v1447
        %v1792 = vcombine.high %v1365, %v1447
        %v1794 = vunpack.c.l.s4 1983009808
        %v1795 = vunpack.c.0.s8 %v1794
        %v1796 = vlaneseq
        %v1797 = vshrl.u32 %v1796, 7
        %v1798 = vsub.s32 %v1795, %v1797
        %v1799 = vrot.slane %v1791, %v1798
        %v1801 = vunpack.c.l.s4 1983009808
        %v1802 = vunpack.c.0.s8 %v1801
        %v1803 = vlaneseq
        %v1804 = vshrl.u32 %v1803, 7
        %v1805 = vsub.s32 %v1802, %v1804
        %v1806 = vrot.slane %v1792, %v1805
        %v1807 = vcombine.low %v1406, %v1488
        %v1808 = vcombine.high %v1406, %v1488
        %v1810 = vunpack.c.l.s4 1983009808
        %v1811 = vunpack.c.0.s8 %v1810
        %v1812 = vlaneseq
        %v1813 = vshrl.u32 %v1812, 7
        %v1814 = vsub.s32 %v1811, %v1813
        %v1815 = vrot.slane %v1807, %v1814
        %v1817 = vunpack.c.l.s4 1983009808
        %v1818 = vunpack.c.0.s8 %v1817
        %v1819 = vlaneseq
        %v1820 = vshrl.u32 %v1819, 7
        %v1821 = vsub.s32 %v1818, %v1820
        %v1822 = vrot.slane %v1808, %v1821
        %v1823 = vcombine.low %v1529, %v1611
        %v1824 = vcombine.high %v1529, %v1611
        %v1826 = vunpack.c.l.s4 1983009808
        %v1827 = vunpack.c.0.s8 %v1826
        %v1828 = vlaneseq
        %v1829 = vshrl.u32 %v1828, 7
        %v1830 = vsub.s32 %v1827, %v1829
        %v1831 = vrot.slane %v1823, %v1830
        %v1833 = vunpack.c.l.s4 1983009808
        %v1834 = vunpack.c.0.s8 %v1833
        %v1835 = vlaneseq
        %v1836 = vshrl.u32 %v1835, 7
        %v1837 = vsub.s32 %v1834, %v1836
        %v1838 = vrot.slane %v1824, %v1837
        %v1839 = vcombine.low %v1570, %v1652
        %v1840 = vcombine.high %v1570, %v1652
        %v1842 = vunpack.c.l.s4 1983009808
        %v1843 = vunpack.c.0.s8 %v1842
        %v1844 = vlaneseq
        %v1845 = vshrl.u32 %v1844, 7
        %v1846 = vsub.s32 %v1843, %v1845
        %v1847 = vrot.slane %v1839, %v1846
        %v1849 = vunpack.c.l.s4 1983009808
        %v1850 = vunpack.c.0.s8 %v1849
        %v1851 = vlaneseq
        %v1852 = vshrl.u32 %v1851, 7
        %v1853 = vsub.s32 %v1850, %v1852
        %v1854 = vrot.slane %v1840, %v1853
        %v1855 = vcombine.low %v1799, %v1815
        %v1856 = vcombine.high %v1799, %v1815
        %v1858 = vunpack.c.l.s4 1934713408
        %v1859 = vunpack.c.0.s8 %v1858
        %v1860 = vlaneseq
        %v1861 = vshrl.u32 %v1860, 7
        %v1862 = vsub.s32 %v1859, %v1861
        %v1863 = vrot.slane %v1855, %v1862
        %v1865 = vunpack.c.l.s4 1934713408
        %v1866 = vunpack.c.0.s8 %v1865
        %v1867 = vlaneseq
        %v1868 = vshrl.u32 %v1867, 7
        %v1869 = vsub.s32 %v1866, %v1868
        %v1870 = vrot.slane %v1856, %v1869
        %v1871 = vcombine.low %v1806, %v1822
        %v1872 = vcombine.high %v1806, %v1822
        %v1874 = vunpack.c.l.s4 1934713408
        %v1875 = vunpack.c.0.s8 %v1874
        %v1876 = vlaneseq
        %v1877 = vshrl.u32 %v1876, 7
        %v1878 = vsub.s32 %v1875, %v1877
        %v1879 = vrot.slane %v1871, %v1878
        %v1881 = vunpack.c.l.s4 1934713408
        %v1882 = vunpack.c.0.s8 %v1881
        %v1883 = vlaneseq
        %v1884 = vshrl.u32 %v1883, 7
        %v1885 = vsub.s32 %v1882, %v1884
        %v1886 = vrot.slane %v1872, %v1885
        %v1887 = vcombine.low %v1831, %v1847
        %v1888 = vcombine.high %v1831, %v1847
        %v1890 = vunpack.c.l.s4 1934713408
        %v1891 = vunpack.c.0.s8 %v1890
        %v1892 = vlaneseq
        %v1893 = vshrl.u32 %v1892, 7
        %v1894 = vsub.s32 %v1891, %v1893
        %v1895 = vrot.slane %v1887, %v1894
        %v1897 = vunpack.c.l.s4 1934713408
        %v1898 = vunpack.c.0.s8 %v1897
        %v1899 = vlaneseq
        %v1900 = vshrl.u32 %v1899, 7
        %v1901 = vsub.s32 %v1898, %v1900
        %v1902 = vrot.slane %v1888, %v1901
        %v1903 = vcombine.low %v1838, %v1854
        %v1904 = vcombine.high %v1838, %v1854
        %v1906 = vunpack.c.l.s4 1934713408
        %v1907 = vunpack.c.0.s8 %v1906
        %v1908 = vlaneseq
        %v1909 = vshrl.u32 %v1908, 7
        %v1910 = vsub.s32 %v1907, %v1909
        %v1911 = vrot.slane %v1903, %v1910
        %v1913 = vunpack.c.l.s4 1934713408
        %v1914 = vunpack.c.0.s8 %v1913
        %v1915 = vlaneseq
        %v1916 = vshrl.u32 %v1915, 7
        %v1917 = vsub.s32 %v1914, %v1916
        %v1918 = vrot.slane %v1904, %v1917
        %v1919 = vcombine.low %v1863, %v1895
        %v1920 = vcombine.high %v1863, %v1895
        %v1921 = vcombine.low %v1870, %v1902
        %v1922 = vcombine.high %v1870, %v1902
        %v1923 = vcombine.low %v1879, %v1911
        %v1924 = vcombine.high %v1879, %v1911
        %v1925 = vcombine.low %v1886, %v1918
        %v1926 = vcombine.high %v1886, %v1918
        %1928 = vrot.lane.b32.xlu0 %v1784, 16
        %v1929 = vpop.permute.xlu0 %1928
        %1932 = vrot.lane.b32.xlu0 %v1785, 32
        %v1933 = vpop.permute.xlu0 %1932
        %1936 = vrot.lane.b32.xlu0 %v1786, 48
        %v1937 = vpop.permute.xlu0 %1936
        %1940 = vrot.lane.b32.xlu0 %v1787, 64
        %v1941 = vpop.permute.xlu0 %1940
        %1944 = vrot.lane.b32.xlu0 %v1788, 80
        %v1945 = vpop.permute.xlu0 %1944
        %1948 = vrot.lane.b32.xlu0 %v1789, 96
        %v1949 = vpop.permute.xlu0 %1948
        %1952 = vrot.lane.b32.xlu0 %v1790, 112
        %v1953 = vpop.permute.xlu0 %1952
        %1956 = vrot.lane.b32.xlu0 %v1920, 16
        %v1957 = vpop.permute.xlu0 %1956
        %1960 = vrot.lane.b32.xlu0 %v1921, 32
        %v1961 = vpop.permute.xlu0 %1960
        %1964 = vrot.lane.b32.xlu0 %v1922, 48
        %v1965 = vpop.permute.xlu0 %1964
        %1968 = vrot.lane.b32.xlu0 %v1923, 64
        %v1969 = vpop.permute.xlu0 %1968
        %1972 = vrot.lane.b32.xlu0 %v1924, 80
        %v1973 = vpop.permute.xlu0 %1972
        %1976 = vrot.lane.b32.xlu0 %v1925, 96
        %v1977 = vpop.permute.xlu0 %1976
        %1980 = vrot.lane.b32.xlu0 %v1926, 112
        %v1981 = vpop.permute.xlu0 %1980
        %vm1983 = vcmask 130048
        %v1984 = vsel %vm1983, %v1783, %v1929
        %vm1985 = vcmask 261120
        %v1986 = vsel %vm1985, %v1984, %v1933
        %vm1987 = vcmask 392192
        %v1988 = vsel %vm1987, %v1986, %v1937
        %vm1989 = vcmask 523264
        %v1990 = vsel %vm1989, %v1988, %v1941
        %vm1991 = vcmask 654336
        %v1992 = vsel %vm1991, %v1990, %v1945
        %vm1993 = vcmask 785408
        %v1994 = vsel %vm1993, %v1992, %v1949
        %vm1995 = vcmask 916480
        %v1996 = vsel %vm1995, %v1994, %v1953
        %v1997 = vsel %vm1983, %v1919, %v1957
        %v1998 = vsel %vm1985, %v1997, %v1961
        %v1999 = vsel %vm1987, %v1998, %v1965
        %v2000 = vsel %vm1989, %v1999, %v1969
        %v2001 = vsel %vm1991, %v2000, %v1973
        %v2002 = vsel %vm1993, %v2001, %v1977
        %v2003 = vsel %vm1995, %v2002, %v1981
        %v2004 = vpack.c.bf16 %v1996, %v1996
        %v2005 = vpack.c.bf16 %v2003, %v2003
        %v2006 = vld [vmem:[%s191] sm:$0xff]
        %v2007 = vld [vmem:[#allocation5] sm:$0xf]
        %v2008 = vld [vmem:[#allocation5 + $0x4] sm:$0xf]
        %v2009 = vld [vmem:[#allocation5 + $0x8] sm:$0xf]
        %v2010 = vld [vmem:[#allocation5 + $0xc] sm:$0xf]
        %v2011 = vld [vmem:[#allocation5 + $0x10] sm:$0xf]
        %v2012 = vld [vmem:[#allocation5 + $0x14] sm:$0xf]
        %v2013 = vld [vmem:[#allocation5 + $0x18] sm:$0xf]
        %v2014 = vld [vmem:[#allocation5 + $0x1c] sm:$0xf]
        %v2015 = vld [vmem:[#allocation5 + $0x20] sm:$0xf]
        %v2016 = vld [vmem:[#allocation5 + $0x24] sm:$0xf]
        %v2017 = vld [vmem:[#allocation5 + $0x28] sm:$0xf]
        %v2018 = vld [vmem:[#allocation5 + $0x2c] sm:$0xf]
        %v2019 = vld [vmem:[#allocation5 + $0x30] sm:$0xf]
        %v2020 = vld [vmem:[#allocation5 + $0x34] sm:$0xf]
        %v2021 = vld [vmem:[#allocation5 + $0x38] sm:$0xf]
        %v2022 = vld [vmem:[#allocation5 + $0x3c] sm:$0xf]
        %v2023 = vld [vmem:[#allocation5 + $0x40] sm:$0xf]
        %v2024 = vld [vmem:[#allocation5 + $0x44] sm:$0xf]
        %v2025 = vld [vmem:[#allocation5 + $0x48] sm:$0xf]
        %v2026 = vld [vmem:[#allocation5 + $0x4c] sm:$0xf]
        %v2027 = vld [vmem:[#allocation5 + $0x50] sm:$0xf]
        %v2028 = vld [vmem:[#allocation5 + $0x54] sm:$0xf]
        %v2029 = vld [vmem:[#allocation5 + $0x58] sm:$0xf]
        %v2030 = vld [vmem:[#allocation5 + $0x5c] sm:$0xf]
        %v2031 = vld [vmem:[#allocation5 + $0x60] sm:$0xf]
        %v2032 = vld [vmem:[#allocation5 + $0x64] sm:$0xf]
        %v2033 = vld [vmem:[#allocation5 + $0x68] sm:$0xf]
        %v2034 = vld [vmem:[#allocation5 + $0x6c] sm:$0xf]
        %v2035 = vld [vmem:[#allocation5 + $0x70] sm:$0xf]
        %v2036 = vld [vmem:[#allocation5 + $0x74] sm:$0xf]
        %v2037 = vld [vmem:[#allocation5 + $0x78] sm:$0xf]
        %v2038 = vld [vmem:[#allocation5 + $0x7c] sm:$0xf]
        %v2071 = vunpack.c.l.b16 %v2007
        %v2072 = vunpack.c.l.b16 %v2008
        %v2073 = vunpack.c.l.b16 %v2009
        %v2074 = vunpack.c.l.b16 %v2010
        %v2075 = vunpack.c.l.b16 %v2011
        %v2076 = vunpack.c.l.b16 %v2012
        %v2077 = vunpack.c.l.b16 %v2013
        %v2078 = vunpack.c.l.b16 %v2014
        %v2079 = vunpack.c.l.b16 %v2015
        %v2080 = vunpack.c.l.b16 %v2016
        %v2081 = vunpack.c.l.b16 %v2017
        %v2082 = vunpack.c.l.b16 %v2018
        %v2083 = vunpack.c.l.b16 %v2019
        %v2084 = vunpack.c.l.b16 %v2020
        %v2085 = vunpack.c.l.b16 %v2021
        %v2086 = vunpack.c.l.b16 %v2022
        %v2087 = vunpack.c.l.b16 %v2023
        %v2088 = vunpack.c.l.b16 %v2024
        %v2089 = vunpack.c.l.b16 %v2025
        %v2090 = vunpack.c.l.b16 %v2026
        %v2091 = vunpack.c.l.b16 %v2027
        %v2092 = vunpack.c.l.b16 %v2028
        %v2093 = vunpack.c.l.b16 %v2029
        %v2094 = vunpack.c.l.b16 %v2030
        %v2095 = vunpack.c.l.b16 %v2031
        %v2096 = vunpack.c.l.b16 %v2032
        %v2097 = vunpack.c.l.b16 %v2033
        %v2098 = vunpack.c.l.b16 %v2034
        %v2099 = vunpack.c.l.b16 %v2035
        %v2100 = vunpack.c.l.b16 %v2036
        %v2101 = vunpack.c.l.b16 %v2037
        %v2102 = vunpack.c.l.b16 %v2038
        %v2103 = vpack.c.b16 %v2072, %v2071
        %v2104 = vpack.c.b16 %v2074, %v2073
        %v2105 = vpack.c.b16 %v2076, %v2075
        %v2106 = vpack.c.b16 %v2078, %v2077
        %v2107 = vpack.c.b16 %v2080, %v2079
        %v2108 = vpack.c.b16 %v2082, %v2081
        %v2109 = vpack.c.b16 %v2084, %v2083
        %v2110 = vpack.c.b16 %v2086, %v2085
        %v2111 = vpack.c.b16 %v2088, %v2087
        %v2112 = vpack.c.b16 %v2090, %v2089
        %v2113 = vpack.c.b16 %v2092, %v2091
        %v2114 = vpack.c.b16 %v2094, %v2093
        %v2115 = vpack.c.b16 %v2096, %v2095
        %v2116 = vpack.c.b16 %v2098, %v2097
        %v2117 = vpack.c.b16 %v2100, %v2099
        %v2118 = vpack.c.b16 %v2102, %v2101
        %2135 = vmatprep.subr.bf16.mxu0 0
        %2136 = vmatpush1.bf16.msra.mxu0 %v2103
        %2137 = vmatprep.subr.bf16.mxu0 0
        %2138 = vmatpush1.bf16.msra.mxu0 %v2104
        %2139 = vmatprep.subr.bf16.mxu0 0
        %2140 = vmatpush1.bf16.msra.mxu0 %v2105
        %2141 = vmatprep.subr.bf16.mxu0 0
        %2142 = vmatpush1.bf16.msra.mxu0 %v2106
        %2143 = vmatprep.subr.bf16.mxu0 0
        %2144 = vmatpush1.bf16.msra.mxu0 %v2107
        %2145 = vmatprep.subr.bf16.mxu0 0
        %2146 = vmatpush1.bf16.msra.mxu0 %v2108
        %2147 = vmatprep.subr.bf16.mxu0 0
        %2148 = vmatpush1.bf16.msra.mxu0 %v2109
        %2149 = vmatprep.subr.bf16.mxu0 0
        %2150 = vmatpush1.bf16.msra.mxu0 %v2110
        %2151 = vmatprep.subr.bf16.mxu0 0
        %2152 = vmatpush1.bf16.msra.mxu0 %v2111
        %2153 = vmatprep.subr.bf16.mxu0 0
        %2154 = vmatpush1.bf16.msra.mxu0 %v2112
        %2155 = vmatprep.subr.bf16.mxu0 0
        %2156 = vmatpush1.bf16.msra.mxu0 %v2113
        %2157 = vmatprep.subr.bf16.mxu0 0
        %2158 = vmatpush1.bf16.msra.mxu0 %v2114
        %2159 = vmatprep.subr.bf16.mxu0 0
        %2160 = vmatpush1.bf16.msra.mxu0 %v2115
        %2161 = vmatprep.subr.bf16.mxu0 0
        %2162 = vmatpush1.bf16.msra.mxu0 %v2116
        %2163 = vmatprep.subr.bf16.mxu0 0
        %2164 = vmatpush1.bf16.msra.mxu0 %v2117
        %2165 = vmatprep.subr.bf16.mxu0 0
        %2166 = vmatpush1.bf16.msra.mxu0 %v2118
        %2167 = vmatprep.mubr.bf16.mxu0 %v2005
        %2168 = vmatmul.mubr.bf16.gmra.mrb[0].mxu0 %v2004
        %v2169 = vpop.f32.mrb[0].mxu0
        %v2170 = vadd.f32 0.0, %v2169
        %v2171 = vpop.f32.mrb[0].mxu0
        %v2172 = vpop.f32.mrb[0].mxu0
        %v2173 = vpop.f32.mrb[0].mxu0
        %2174 = vdwg.mxu0
        %v2175 = vadd.f32 %v2006, %v2170
        %2176 = vst [vmem:[%s191] sm:$0xff] %v2175
        %s2177 = sand.u32 %s89, 1
        %s2178 = scalar_lea.sflag [#allocation4], %s2177
        %s2179 = sand.u32 %s89, 1
        %s2180 = smul.addr %s2179, 8
        %s2181 = scalar_lea.vmem [#allocation7], %s2180
        // Predicated region
        $region41: #{tpu_custom_call.1} parent=27 // pred_check
          %p2182 = pneg %p99
        $region42: #{tpu_custom_call.1} parent=27 // pred_check_branch
          %2184 = sbr.rel (%p2182) target = $region44
        $region43: #{tpu_custom_call.1} parent=27 // pred_region
          %s2186 = ssub.s32 128, 128
          %2187 = vsyncadd %s2178, %s2186
          %s2188 = smul.addr %s24, 128
          %s2189 = scalar_lea.hbm %s2, %s2188
          %s2191 = sshll.u32 %s2181, 4
          %s2192 = int_to_ptr.vmem [resolvable:$true] %s2191
          %2194 = dma.vmem_to_hbm [thread:$0]  %s2192, 128, %s2189, %s2178
        $region44: #{tpu_custom_call.1} parent=27 // pred_fallthru
          _
      $region28: #{tpu_custom_call.1} parent=5 // pred_fallthru
        _
      %p2195 = scmp.le.s32.totalorder 2, %s15
      // Predicated region
      $region45: #{tpu_custom_call.1} parent=5 // pred_check
        %p2196 = pneg %p2195
      $region46: #{tpu_custom_call.1} parent=5 // pred_check_branch
        %2198 = sbr.rel (%p2196) target = $region48
      $region47: #{tpu_custom_call.1} parent=5 // pred_region
        %s2199 = ssub.s32 %s15, 2
        // Predicated region
        $region49: #{tpu_custom_call.1} parent=47 // pred_check
          %p2200 = pneg %p105
        $region50: #{tpu_custom_call.1} parent=47 // pred_check_branch
          %2202 = sbr.rel (%p2200) target = $region52
        $region51: #{tpu_custom_call.1} parent=47 // pred_region
          %s2203 = sand.u32 %s90, 1
          %s2204 = scalar_lea.sflag [#allocation4], %s2203
          %s2205 = sand.u32 %s90, 1
          %s2206 = smul.addr %s2205, 8
          %s2207 = scalar_lea.vmem [#allocation7], %s2206
          %2208 = dma.done %s2204, 128
        $region52: #{tpu_custom_call.1} parent=47 // pred_fallthru
          _
      $region48: #{tpu_custom_call.1} parent=5 // pred_fallthru
        _
    $region6: #{tpu_custom_call.1} parent=1 // loop_footer
      %s19 = sadd.s32 1, %s15
    $region7: #{tpu_custom_call.1} parent=1 // loop_footer_branch
      %14 = sbr.rel target = $region3
    $region8: #{tpu_custom_call.1} parent=1 // loop_exit
      _
    %2209 = vsyncpa [#allocation3], 1
    %s2210 = scalar_lea.sflag [#allocation3], 1
    %2211 = vsyncpa %s2210, 1
    %2212 = vsyncpa [#allocation6], 1
    %2213 = vsyncpa [#allocation4], 1
    %s2214 = scalar_lea.sflag [#allocation4], 1
    %2215 = vsyncpa %s2214, 1

</llo_original>
